<compile_context>
chip_gen: v5e
topology: v5e:2x2
jax: 0.10.0
libtpu: 0.0.40
codegen_flags: <defaults>
</compile_context>

<pallas_src>
import functools

import jax
import jax.numpy as jnp
from jax.experimental import pallas as pl
from jax.experimental.pallas import tpu as pltpu

EPS = 1e-5                  # PyTorch BatchNorm2d default
LANE = 128                  # TPU lane width; channels padded to multiples of this
MXU_DTYPE = jnp.bfloat16    # matmul operand dtype (f32 accumulation)
VMEM_LIMIT = 32 * 1024 * 1024   # safe on v7x (64 MiB/TC); v5e/v6e have headroom


# ----------------------------------------------------------------------------
# small static helpers
# ----------------------------------------------------------------------------
def _round_up(x, m):
    return (x + m - 1) // m * m


def _pad_last(x, target):
    pad = target - x.shape[-1]
    if pad == 0:
        return x
    cfg = [(0, 0)] * (x.ndim - 1) + [(0, pad)]
    return jnp.pad(x, cfg)


def _m_tile(M, target):
    """Row tile: multiple of 8, never larger than needed, and >=2 blocks along M
    when possible so both TensorCores get work on v7x."""
    if M <= 8:
        return M
    tm = min(target, _round_up(M, 8))
    if pl.cdiv(M, tm) < 2:
        tm = _round_up(pl.cdiv(M, 2), 8)
    return tm


def _c_tile(C, target=512):
    """Channel tile: a divisor of the (128-padded) channel dim, <= target."""
    if C <= target:
        return C
    for t in (512, 384, 256, 128):
        if t <= target and C % t == 0:
            return t
    return C


def _k_tile(K):
    """K tile: keep a single resident K block when it fits comfortably, so the
    weight tile stays in VMEM across M blocks; otherwise split."""
    if K <= 4096:
        return K
    for t in (2048, 1536, 1024, 512, 384, 256, 128):
        if K % t == 0:
            return t
    return K  # unreachable here: K is always a multiple of 128


# ----------------------------------------------------------------------------
# Pallas kernels
# ----------------------------------------------------------------------------
def _mm_kernel(x_ref, w_ref, b_ref, o_ref, acc_ref):
    # (tm, tk) @ (tk, tn) accumulated over the K grid axis; bias fused at the end.
    @pl.when(pl.program_id(2) == 0)
    def _():
        acc_ref[...] = jnp.zeros_like(acc_ref)

    acc_ref[...] += jnp.dot(x_ref[...], w_ref[...],
                            preferred_element_type=jnp.float32)

    @pl.when(pl.program_id(2) == pl.num_programs(2) - 1)
    def _():
        o_ref[...] = (acc_ref[...] + b_ref[...]).astype(o_ref.dtype)


def _mm_res_kernel(x_ref, w_ref, b_ref, r_ref, o_ref, acc_ref):
    # Same, plus an f32 residual added in the epilogue (identity shortcut).
    @pl.when(pl.program_id(2) == 0)
    def _():
        acc_ref[...] = jnp.zeros_like(acc_ref)

    acc_ref[...] += jnp.dot(x_ref[...], w_ref[...],
                            preferred_element_type=jnp.float32)

    @pl.when(pl.program_id(2) == pl.num_programs(2) - 1)
    def _():
        o_ref[...] = (acc_ref[...] + b_ref[...] + r_ref[...]).astype(o_ref.dtype)


def _mm_stats_kernel(x_ref, w_ref, b_ref, o_ref, sum_ref, sq_ref, acc_ref):
    # Matmul + bias, and fused per-channel batch statistics of the PRE-bias
    # f32 accumulator (for the following BatchNorm).  The tiny cross-M-block
    # reduction and the bias correction of the mean happen in the wrapper.
    @pl.when(pl.program_id(2) == 0)
    def _():
        acc_ref[...] = jnp.zeros_like(acc_ref)

    acc_ref[...] += jnp.dot(x_ref[...], w_ref[...],
                            preferred_element_type=jnp.float32)

    @pl.when(pl.program_id(2) == pl.num_programs(2) - 1)
    def _():
        acc = acc_ref[...]
        o_ref[...] = (acc + b_ref[...]).astype(o_ref.dtype)
        # VPU work hidden under the MXU-bound last K step.
        sum_ref[...] = jnp.sum(acc, axis=0, keepdims=True)[None]
        sq_ref[...] = jnp.sum(acc * acc, axis=0, keepdims=True)[None]


def _bn_stats_kernel(x_ref, sum_ref, sq_ref, *, m_total, tm, ragged):
    # Accumulate per-channel sum / sum-of-squares across M tiles (reduction last).
    mi = pl.program_id(1)

    @pl.when(mi == 0)
    def _():
        sum_ref[...] = jnp.zeros_like(sum_ref)
        sq_ref[...] = jnp.zeros_like(sq_ref)

    def accum(x):
        sum_ref[...] += jnp.sum(x, axis=0, keepdims=True)
        sq_ref[...] += jnp.sum(x * x, axis=0, keepdims=True)

    if ragged:
        last = pl.num_programs(1) - 1

        @pl.when(mi != last)
        def _():
            accum(x_ref[...])

        @pl.when(mi == last)   # only the tail tile pays the masking VPU cost
        def _():
            rows = jax.lax.broadcasted_iota(jnp.int32, x_ref.shape, 0) + mi * tm
            accum(jnp.where(rows < m_total, x_ref[...], 0.0))
    else:
        accum(x_ref[...])


def _affine_kernel(x_ref, scale_ref, shift_ref, o_ref, *, relu):
    # y = x * scale + shift (precomputed per-channel scale/shift), optional ReLU.
    y = x_ref[...].astype(jnp.float32) * scale_ref[...] + shift_ref[...]
    if relu:
        y = jnp.maximum(y, 0.0)
    o_ref[...] = y.astype(o_ref.dtype)


# ----------------------------------------------------------------------------
# Pallas wrappers
# ----------------------------------------------------------------------------
def conv_matmul(x, w, b, *, residual=None, want_stats=False,
                out_dtype=jnp.float32, tm=None, tm_target=512, tn_target=512):
    """(M, K) @ (K, Cp) + bias(1, Cp) [+ residual(M, Cp)] -> (M, Cp).
    Optionally also returns per-channel (sum, sum_sq) of the pre-bias f32
    accumulator (fused BatchNorm statistics).  Grid order (Cout, M, K) keeps
    the weight block resident in VMEM across the inner M loop when K fits one
    block; K-split accumulation bounds VMEM otherwise."""
    M, K = x.shape
    Kw, Cp = w.shape
    assert K == Kw
    if tm is None:
        tm = _m_tile(M, tm_target)
    tn = _c_tile(Cp, tn_target)
    tk = _k_tile(K)
    gm, gn, gk = pl.cdiv(M, tm), Cp // tn, K // tk

    in_specs = [
        pl.BlockSpec((tm, tk), lambda j, i, k: (i, k)),
        pl.BlockSpec((tk, tn), lambda j, i, k: (k, j)),
        pl.BlockSpec((1, tn), lambda j, i, k: (0, j)),
    ]
    args = [x, w, b]
    o_spec = pl.BlockSpec((tm, tn), lambda j, i, k: (i, j))
    kernel = _mm_kernel

    if residual is not None:
        assert not want_stats
        in_specs.append(pl.BlockSpec((tm, tn), lambda j, i, k: (i, j)))
        args.append(residual)
        kernel = _mm_res_kernel

    if want_stats:
        assert M % tm == 0, "caller must row-pad when fusing stats"
        s_shape = jax.ShapeDtypeStruct((gm, 1, Cp), jnp.float32)
        s_spec = pl.BlockSpec((1, 1, tn), lambda j, i, k: (i, 0, j))
        out_shape = (jax.ShapeDtypeStruct((M, Cp), out_dtype), s_shape, s_shape)
        out_specs = (o_spec, s_spec, s_spec)
        kernel = _mm_stats_kernel
    else:
        out_shape = jax.ShapeDtypeStruct((M, Cp), out_dtype)
        out_specs = o_spec

    res = pl.pallas_call(
        kernel,
        out_shape=out_shape,
        grid=(gn, gm, gk),
        in_specs=in_specs,
        out_specs=out_specs,
        scratch_shapes=[pltpu.VMEM((tm, tn), jnp.float32)],
        compiler_params=pltpu.CompilerParams(
            dimension_semantics=("parallel", "parallel", "arbitrary"),
            vmem_limit_bytes=VMEM_LIMIT,
        ),
    )(*args)

    if want_stats:
        out, s, ss = res
        return out, s.sum(axis=(0, 1)), ss.sum(axis=(0, 1))
    return res


def bn_batch_stats(x2d, *, tm_target=1024, tc_target=512):
    """Per-channel (sum, sum_sq) over rows of an (M, Cp) slab, tiled over M."""
    M, Cp = x2d.shape
    tm = _m_tile(M, tm_target)
    tc = _c_tile(Cp, tc_target)
    gm = pl.cdiv(M, tm)
    ragged = (M % tm) != 0
    out = jax.ShapeDtypeStruct((1, Cp), jnp.float32)
    return pl.pallas_call(
        functools.partial(_bn_stats_kernel, m_total=M, tm=tm, ragged=ragged),
        out_shape=(out, out),
        grid=(Cp // tc, gm),                         # reduction (M) axis last
        in_specs=[pl.BlockSpec((tm, tc), lambda ci, mi: (mi, ci))],
        out_specs=(pl.BlockSpec((1, tc), lambda ci, mi: (0, ci)),
                   pl.BlockSpec((1, tc), lambda ci, mi: (0, ci))),
        compiler_params=pltpu.CompilerParams(
            dimension_semantics=("parallel", "arbitrary")),
    )(x2d)


def bn_affine(x2d, scale, shift, *, relu, out_dtype,
              tm_target=1024, tc_target=512):
    """relu(x * scale + shift) elementwise, tiled (M, C) grid, lane-dense C."""
    M, Cp = x2d.shape
    tm = _m_tile(M, tm_target)
    tc = _c_tile(Cp, tc_target)
    return pl.pallas_call(
        functools.partial(_affine_kernel, relu=relu),
        out_shape=jax.ShapeDtypeStruct((M, Cp), out_dtype),
        grid=(pl.cdiv(M, tm), Cp // tc),
        in_specs=[pl.BlockSpec((tm, tc), lambda i, j: (i, j)),
                  pl.BlockSpec((1, tc), lambda i, j: (0, j)),
                  pl.BlockSpec((1, tc), lambda i, j: (0, j))],
        out_specs=pl.BlockSpec((tm, tc), lambda i, j: (i, j)),
        compiler_params=pltpu.CompilerParams(
            dimension_semantics=("parallel", "parallel")),
    )(x2d, scale, shift)


def _scale_shift(s, ss, count, gamma_p, beta_p, bias_p=None):
    """Training-mode (biased) batch stats -> fused per-channel scale/shift.
    If the stats were taken on a pre-bias accumulator, pass bias_p: the variance
    is shift-invariant, only the mean needs the bias correction."""
    s = s.reshape(-1)
    ss = ss.reshape(-1)
    mean = s / count
    var = jnp.maximum(ss / count - mean * mean, 0.0)
    if bias_p is not None:
        mean = mean + bias_p
    scale = gamma_p * jax.lax.rsqrt(var + EPS)
    shift = beta_p - mean * scale
    return scale.reshape(1, -1), shift.reshape(1, -1)


# ----------------------------------------------------------------------------
# JAX glue: im2col (packed at unpadded channel count), weight reshaping
# ----------------------------------------------------------------------------
def _im2col_3x3(x_nhwc, stride, extra=None):
    """3x3 patches, padding=1.  Returns ((N*Ho*Wo, 9*C [+Ce]), (Ho, Wo)).
    Channels are kept UNPADDED here; the combined K dim is padded to a multiple
    of 128 once by the caller.  `extra` (N, Ho, Wo, Ce) is appended as trailing
    K columns (fuses the 1x1 projection-shortcut matmul into the conv2 matmul)."""
    N, H, W, C = x_nhwc.shape
    Ho = (H + 2 - 3) // stride + 1
    Wo = (W + 2 - 3) // stride + 1
    xp = jnp.pad(x_nhwc, ((0, 0), (1, 1), (1, 1), (0, 0)))
    cols = []
    for dh in range(3):
        for dw in range(3):
            cols.append(xp[:, dh: dh + (Ho - 1) * stride + 1: stride,
                           dw: dw + (Wo - 1) * stride + 1: stride, :])
    if extra is not None:
        cols.append(extra)
    patches = jnp.concatenate(cols, axis=-1)
    return patches.reshape(N * Ho * Wo, patches.shape[-1]), (Ho, Wo)


def _w3x3_to_2d(w_oihw, cout_p, k_pad=None):
    # (Cout, Cin, 3, 3) -> (3, 3, Cin, Cout) -> (9*Cin, Cout_p); matches im2col
    # tap-major/channel-minor column order.  Cin stays unpadded (packed K).
    Cout, Cin, KH, KW = w_oihw.shape
    w = jnp.transpose(w_oihw, (2, 3, 1, 0)).reshape(KH * KW * Cin, Cout)
    w = jnp.pad(w, ((0, 0), (0, cout_p - Cout)))
    if k_pad is not None:
        w = jnp.pad(w, ((0, k_pad - w.shape[0]), (0, 0)))
    return w


# ----------------------------------------------------------------------------
# Forward pass
# ----------------------------------------------------------------------------
@functools.partial(jax.jit, static_argnames=("stride",))
def wide_residual_block_forward(x_nchw, params, *, stride):
    """Pallas forward of WideResidualBlock (training-mode BN, dropout_p=0.0)."""
    N, Cin, H, W = x_nchw.shape
    Cout = params["w1"].shape[0]
    Cin_p, Cout_p = _round_up(Cin, LANE), _round_up(Cout, LANE)

    # NHWC; channels zero-padded to a lane-dense 128-multiple for the
    # elementwise BN kernels only (the conv K dims are packed at unpadded width).
    x = jnp.transpose(x_nchw, (0, 2, 3, 1)).astype(jnp.float32)
    M0 = N * H * W
    x2d = _pad_last(x, Cin_p).reshape(M0, Cin_p)

    # ---- BN1 -> ReLU (batch stats; fused scale/shift; bf16 out feeds the MXU)
    s1, ss1 = bn_batch_stats(x2d)
    sc1, sh1 = _scale_shift(s1, ss1, M0, _pad_last(params["g1"], Cin_p),
                            _pad_last(params["be1"], Cin_p))
    a = bn_affine(x2d, sc1, sh1, relu=True, out_dtype=MXU_DTYPE)
    a = a.reshape(N, H, W, Cin_p)[..., :Cin]       # unpadded channels for packed taps

    # ---- conv1: 3x3 / stride, padding=1, + bias; BN2 batch-stats fused into
    #      the matmul epilogue; y1 stored bf16 (stats stay exact: f32 acc).
    p1, (Ho, Wo) = _im2col_3x3(a, stride)          # (M1, 9*Cin) bf16, packed K
    M1 = N * Ho * Wo
    K1 = _round_up(p1.shape[1], LANE)
    tm1 = _m_tile(M1, 512)
    M1p = _round_up(M1, tm1)
    # zero row-padding keeps the fused (pre-bias) stats exact for the tail tile.
    p1 = jnp.pad(p1, ((0, M1p - M1), (0, K1 - p1.shape[1])))
    w1 = _w3x3_to_2d(params["w1"], Cout_p, k_pad=K1).astype(MXU_DTYPE)
    b1 = _pad_last(params["b1"], Cout_p)
    y1, s2, ss2 = conv_matmul(p1, w1, b1.reshape(1, Cout_p),
                              want_stats=True, out_dtype=MXU_DTYPE, tm=tm1)
    y1 = y1[:M1]                                   # (M1, Cout_p) bf16
    # nn.Dropout(p=0.0) is the identity for this module's default config.
    # TODO(synk): nonzero dropout_p would need a pltpu.prng_* masking kernel here.

    # ---- BN2 -> ReLU (scale/shift derived from the fused pre-bias acc stats)
    sc2, sh2 = _scale_shift(s2, ss2, M1, _pad_last(params["g2"], Cout_p),
                            _pad_last(params["be2"], Cout_p), bias_p=b1)
    bact = bn_affine(y1, sc2, sh2, relu=True, out_dtype=MXU_DTYPE)
    bact = bact.reshape(N, Ho, Wo, Cout_p)[..., :Cout]

    # ---- conv2 (3x3, stride 1, + bias) with the shortcut fused into one matmul
    if stride != 1 or Cin != Cout:
        # projection shortcut: its 1x1 contraction is concatenated onto K.
        xs = x[:, ::stride, ::stride, :].astype(MXU_DTYPE)     # (N, Ho, Wo, Cin)
        p2, _ = _im2col_3x3(bact, 1, extra=xs)                 # K = 9*Cout + Cin
        Kraw = p2.shape[1]
        K2 = _round_up(Kraw, LANE)
        p2 = jnp.pad(p2, ((0, 0), (0, K2 - Kraw)))
        w2 = _w3x3_to_2d(params["w2"], Cout_p)                 # (9*Cout, Cout_p)
        wsc = jnp.pad(params["wsc"].reshape(Cout, Cin).T,
                      ((0, 0), (0, Cout_p - Cout)))            # (Cin, Cout_p)
        wcat = jnp.pad(jnp.concatenate([w2, wsc], axis=0),
                       ((0, K2 - Kraw), (0, 0))).astype(MXU_DTYPE)
        bcat = (_pad_last(params["b2"], Cout_p)
                + _pad_last(params["bsc"], Cout_p)).reshape(1, Cout_p)
        out2d = conv_matmul(p2, wcat, bcat)
    else:
        # identity shortcut: x added in f32 in the matmul epilogue.
        p2, _ = _im2col_3x3(bact, 1)
        Kraw = p2.shape[1]
        K2 = _round_up(Kraw, LANE)
        p2 = jnp.pad(p2, ((0, 0), (0, K2 - Kraw)))
        w2 = _w3x3_to_2d(params["w2"], Cout_p, k_pad=K2).astype(MXU_DTYPE)
        b2 = _pad_last(params["b2"], Cout_p).reshape(1, Cout_p)
        out2d = conv_matmul(p2, w2, b2, residual=x2d)

    out = out2d[:, :Cout].reshape(N, Ho, Wo, Cout)
    return jnp.transpose(out, (0, 3, 1, 2))                    # back to NCHW


# ----------------------------------------------------------------------------
# Pure-JAX reference (PyTorch training-mode semantics) for a sanity check
# ----------------------------------------------------------------------------
def _reference(x, p, stride):
    def conv(x, w, b, s, pad):
        y = jax.lax.conv_general_dilated(
            x, w, (s, s), pad, dimension_numbers=("NCHW", "OIHW", "NCHW"))
        return y + b[None, :, None, None]

    def bn(y, g, be):
        m = jnp.mean(y, axis=(0, 2, 3), keepdims=True)
        v = jnp.mean((y - m) ** 2, axis=(0, 2, 3), keepdims=True)
        return ((y - m) * jax.lax.rsqrt(v + EPS) * g[None, :, None, None]
                + be[None, :, None, None])

    out = conv(jax.nn.relu(bn(x, p["g1"], p["be1"])), p["w1"], p["b1"],
               stride, ((1, 1), (1, 1)))
    out = conv(jax.nn.relu(bn(out, p["g2"], p["be2"])), p["w2"], p["b2"],
               1, ((1, 1), (1, 1)))
    cin, cout = p["w1"].shape[1], p["w1"].shape[0]
    if stride != 1 or cin != cout:
        sc = conv(x, p["wsc"], p["bsc"], stride, ((0, 0), (0, 0)))
    else:
        sc = x
    return out + sc


# ----------------------------------------------------------------------------
# main
# ----------------------------------------------------------------------------
def _make_params(key, cin, cout):
    ks = jax.random.split(key, 10)
    n = jax.random.normal
    return {
        "g1": 1.0 + 0.1 * n(ks[0], (cin,), jnp.float32),
        "be1": 0.1 * n(ks[1], (cin,), jnp.float32),
        "w1": 0.1 * n(ks[2], (cout, cin, 3, 3), jnp.float32),
        "b1": 0.1 * n(ks[3], (cout,), jnp.float32),
        "g2": 1.0 + 0.1 * n(ks[4], (cout,), jnp.float32),
        "be2": 0.1 * n(ks[5], (cout,), jnp.float32),
        "w2": 0.1 * n(ks[6], (cout, cout, 3, 3), jnp.float32),
        "b2": 0.1 * n(ks[7], (cout,), jnp.float32),
        "wsc": 0.1 * n(ks[8], (cout, cin, 1, 1), jnp.float32),
        "bsc": 0.1 * n(ks[9], (cout,), jnp.float32),
    }


if __name__ == "__main__":
    key = jax.random.PRNGKey(0)
    kp, kx1, kx2 = jax.random.split(key, 3)
    # bf16 MXU operands (f32 accumulation) -> looser tolerance vs the f32 reference.
    tol = 5e-2 if MXU_DTYPE == jnp.bfloat16 else 1e-4

    # Config A: projection shortcut (Cin=4 -> Cout=8, stride=2), x: (2, 4, 16, 16)
    pA = _make_params(kp, 4, 8)
    xA = jax.random.normal(kx1, (2, 4, 16, 16), jnp.float32)
    outA = jax.block_until_ready(wide_residual_block_forward(xA, pA, stride=2))
    assert outA.shape == (2, 8, 8, 8), outA.shape
    refA = _reference(xA, pA, 2)
    assert jnp.allclose(outA, refA, rtol=tol, atol=tol), \
        float(jnp.max(jnp.abs(outA - refA)))

    # Config B: identity shortcut (Cin=Cout=8, stride=1), x: (2, 8, 16, 16)
    pB = _make_params(kp, 8, 8)
    xB = jax.random.normal(kx2, (2, 8, 16, 16), jnp.float32)
    outB = jax.block_until_ready(wide_residual_block_forward(xB, pB, stride=1))
    assert outB.shape == (2, 8, 16, 16), outB.shape
    refB = _reference(xB, pB, 1)
    assert jnp.allclose(outB, refB, rtol=tol, atol=tol), \
        float(jnp.max(jnp.abs(outB - refB)))

    print("KERNEL_OK")
</pallas_src>

<mosaic_0001>
module attributes {stable_mosaic.version = 11 : i64} {
  func.func @_bn_stats_kernel(%arg0: i32, %arg1: i32, %arg2: memref<256x128xf32, #tpu.memory_space<vmem>>, %arg3: memref<1x128xf32, #tpu.memory_space<vmem>>, %arg4: memref<1x128xf32, #tpu.memory_space<vmem>>) attributes {dimension_semantics = [#tpu.dimension_semantics<parallel>, #tpu.dimension_semantics<arbitrary>], iteration_bounds = array<i64: 1, 2>, scalar_prefetch = 0 : i64, scratch_operands = 0 : i64, tpu.core_type = #tpu.core_type<tc>, window_params = [{transform_indices = @transform_0, window_bounds = array<i64: 256, 128>}, {transform_indices = @transform_1, window_bounds = array<i64: 1, 128>}, {transform_indices = @transform_2, window_bounds = array<i64: 1, 128>}]} {
    %c0_i32 = arith.constant 0 : i32
    %0 = arith.cmpi eq, %arg1, %c0_i32 : i32
    %1 = arith.extui %0 : i1 to i32
    %c0_i32_0 = arith.constant 0 : i32
    %2 = arith.cmpi ne, %1, %c0_i32_0 : i32
    scf.if %2 {
      %cst_11 = arith.constant 0.000000e+00 : f32
      %15 = vector.broadcast %cst_11 : f32 to vector<1x128xf32>
      %c0_12 = arith.constant 0 : index
      %c0_13 = arith.constant 0 : index
      %16 = vector.load %arg3[%c0_12, %c0_13] : memref<1x128xf32, #tpu.memory_space<vmem>>, vector<1x128xf32>
      tpu.vector_store %arg3[%c0_12, %c0_13], %15 {strides = array<i32>} : memref<1x128xf32, #tpu.memory_space<vmem>>, vector<1x128xf32>,
      %cst_14 = arith.constant 0.000000e+00 : f32
      %17 = vector.broadcast %cst_14 : f32 to vector<1x128xf32>
      %c0_15 = arith.constant 0 : index
      %c0_16 = arith.constant 0 : index
      %18 = vector.load %arg4[%c0_15, %c0_16] : memref<1x128xf32, #tpu.memory_space<vmem>>, vector<1x128xf32>
      tpu.vector_store %arg4[%c0_15, %c0_16], %17 {strides = array<i32>} : memref<1x128xf32, #tpu.memory_space<vmem>>, vector<1x128xf32>,
    } else {
    }
    %c0 = arith.constant 0 : index
    %c0_1 = arith.constant 0 : index
    %3 = vector.load %arg2[%c0, %c0_1] : memref<256x128xf32, #tpu.memory_space<vmem>>, vector<256x128xf32>
    %c0_2 = arith.constant 0 : index
    %c0_3 = arith.constant 0 : index
    %4 = vector.load %arg3[%c0_2, %c0_3] : memref<1x128xf32, #tpu.memory_space<vmem>>, vector<1x128xf32>
    %cst = arith.constant dense<0.000000e+00> : vector<128xf32>
    %5 = vector.multi_reduction <add>, %3, %cst [0] : vector<256x128xf32> to vector<128xf32>
    %6 = vector.shape_cast %5 : vector<128xf32> to vector<1x128xf32>
    %7 = arith.addf %4, %6 : vector<1x128xf32>
    %c0_4 = arith.constant 0 : index
    %c0_5 = arith.constant 0 : index
    %8 = vector.load %arg3[%c0_4, %c0_5] : memref<1x128xf32, #tpu.memory_space<vmem>>, vector<1x128xf32>
    tpu.vector_store %arg3[%c0_4, %c0_5], %7 {strides = array<i32>} : memref<1x128xf32, #tpu.memory_space<vmem>>, vector<1x128xf32>,
    %c0_6 = arith.constant 0 : index
    %c0_7 = arith.constant 0 : index
    %9 = vector.load %arg4[%c0_6, %c0_7] : memref<1x128xf32, #tpu.memory_space<vmem>>, vector<1x128xf32>
    %10 = arith.mulf %3, %3 : vector<256x128xf32>
    %cst_8 = arith.constant dense<0.000000e+00> : vector<128xf32>
    %11 = vector.multi_reduction <add>, %10, %cst_8 [0] : vector<256x128xf32> to vector<128xf32>
    %12 = vector.shape_cast %11 : vector<128xf32> to vector<1x128xf32>
    %13 = arith.addf %9, %12 : vector<1x128xf32>
    %c0_9 = arith.constant 0 : index
    %c0_10 = arith.constant 0 : index
    %14 = vector.load %arg4[%c0_9, %c0_10] : memref<1x128xf32, #tpu.memory_space<vmem>>, vector<1x128xf32>
    tpu.vector_store %arg4[%c0_9, %c0_10], %13 {strides = array<i32>} : memref<1x128xf32, #tpu.memory_space<vmem>>, vector<1x128xf32>,
    return
  }
  func.func @transform_0(%arg0: i32, %arg1: i32) -> (i32, i32) {
    %c0_i32 = arith.constant 0 : i32
    return %arg1, %arg0 : i32, i32
  }
  func.func @transform_1(%arg0: i32, %arg1: i32) -> (i32, i32) {
    %c0_i32 = arith.constant 0 : i32
    %c0_i32_0 = arith.constant 0 : i32
    return %c0_i32, %arg0 : i32, i32
  }
  func.func @transform_2(%arg0: i32, %arg1: i32) -> (i32, i32) {
    %c0_i32 = arith.constant 0 : i32
    %c0_i32_0 = arith.constant 0 : i32
    return %c0_i32, %arg0 : i32, i32
  }
}

module attributes {stable_mosaic.version = 11 : i64} {
  func.func @_affine_kernel(%arg0: i32, %arg1: i32, %arg2: memref<256x128xf32, #tpu.memory_space<vmem>>, %arg3: memref<1x128xf32, #tpu.memory_space<vmem>>, %arg4: memref<1x128xf32, #tpu.memory_space<vmem>>, %arg5: memref<256x128xbf16, #tpu.memory_space<vmem>>) attributes {dimension_semantics = [#tpu.dimension_semantics<parallel>, #tpu.dimension_semantics<parallel>], iteration_bounds = array<i64: 2, 1>, scalar_prefetch = 0 : i64, scratch_operands = 0 : i64, tpu.core_type = #tpu.core_type<tc>, window_params = [{transform_indices = @transform_0, window_bounds = array<i64: 256, 128>}, {transform_indices = @transform_1, window_bounds = array<i64: 1, 128>}, {transform_indices = @transform_2, window_bounds = array<i64: 1, 128>}, {transform_indices = @transform_3, window_bounds = array<i64: 256, 128>}]} {
    %c0 = arith.constant 0 : index
    %c0_0 = arith.constant 0 : index
    %0 = vector.load %arg2[%c0, %c0_0] : memref<256x128xf32, #tpu.memory_space<vmem>>, vector<256x128xf32>
    %c0_1 = arith.constant 0 : index
    %c0_2 = arith.constant 0 : index
    %1 = vector.load %arg3[%c0_1, %c0_2] : memref<1x128xf32, #tpu.memory_space<vmem>>, vector<1x128xf32>
    %2 = vector.broadcast %1 : vector<1x128xf32> to vector<256x128xf32>
    %3 = arith.mulf %0, %2 : vector<256x128xf32>
    %c0_3 = arith.constant 0 : index
    %c0_4 = arith.constant 0 : index
    %4 = vector.load %arg4[%c0_3, %c0_4] : memref<1x128xf32, #tpu.memory_space<vmem>>, vector<1x128xf32>
    %5 = vector.broadcast %4 : vector<1x128xf32> to vector<256x128xf32>
    %6 = arith.addf %3, %5 : vector<256x128xf32>
    %cst = arith.constant 0.000000e+00 : f32
    %7 = vector.broadcast %cst : f32 to vector<256x128xf32>
    %8 = arith.maximumf %6, %7 : vector<256x128xf32>
    %9 = arith.truncf %8 : vector<256x128xf32> to vector<256x128xbf16>
    %c0_5 = arith.constant 0 : index
    %c0_6 = arith.constant 0 : index
    %10 = vector.load %arg5[%c0_5, %c0_6] : memref<256x128xbf16, #tpu.memory_space<vmem>>, vector<256x128xbf16>
    tpu.vector_store %arg5[%c0_5, %c0_6], %9 {strides = array<i32>} : memref<256x128xbf16, #tpu.memory_space<vmem>>, vector<256x128xbf16>,
    return
  }
  func.func @transform_0(%arg0: i32, %arg1: i32) -> (i32, i32) {
    %c0_i32 = arith.constant 0 : i32
    return %arg0, %arg1 : i32, i32
  }
  func.func @transform_1(%arg0: i32, %arg1: i32) -> (i32, i32) {
    %c0_i32 = arith.constant 0 : i32
    %c0_i32_0 = arith.constant 0 : i32
    return %c0_i32, %arg1 : i32, i32
  }
  func.func @transform_2(%arg0: i32, %arg1: i32) -> (i32, i32) {
    %c0_i32 = arith.constant 0 : i32
    %c0_i32_0 = arith.constant 0 : i32
    return %c0_i32, %arg1 : i32, i32
  }
  func.func @transform_3(%arg0: i32, %arg1: i32) -> (i32, i32) {
    %c0_i32 = arith.constant 0 : i32
    return %arg0, %arg1 : i32, i32
  }
}

module attributes {stable_mosaic.version = 11 : i64} {
  func.func @_mm_stats_kernel(%arg0: i32, %arg1: i32, %arg2: i32, %arg3: memref<64x128xbf16, #tpu.memory_space<vmem>>, %arg4: memref<128x128xbf16, #tpu.memory_space<vmem>>, %arg5: memref<1x128xf32, #tpu.memory_space<vmem>>, %arg6: memref<64x128xbf16, #tpu.memory_space<vmem>>, %arg7: memref<1x1x128xf32, #tpu.memory_space<vmem>>, %arg8: memref<1x1x128xf32, #tpu.memory_space<vmem>>, %arg9: memref<64x128xf32, #tpu.memory_space<vmem>>) attributes {dimension_semantics = [#tpu.dimension_semantics<parallel>, #tpu.dimension_semantics<parallel>, #tpu.dimension_semantics<arbitrary>], iteration_bounds = array<i64: 1, 2, 1>, scalar_prefetch = 0 : i64, scratch_operands = 1 : i64, tpu.core_type = #tpu.core_type<tc>, window_params = [{transform_indices = @transform_0, window_bounds = array<i64: 64, 128>}, {transform_indices = @transform_1, window_bounds = array<i64: 128, 128>}, {transform_indices = @transform_2, window_bounds = array<i64: 1, 128>}, {transform_indices = @transform_3, window_bounds = array<i64: 64, 128>}, {transform_indices = @transform_4, window_bounds = array<i64: 1, 1, 128>}, {transform_indices = @transform_5, window_bounds = array<i64: 1, 1, 128>}]} {
    %c0_i32 = arith.constant 0 : i32
    %0 = arith.cmpi eq, %arg2, %c0_i32 : i32
    %1 = arith.extui %0 : i1 to i32
    %c0_i32_0 = arith.constant 0 : i32
    %2 = arith.cmpi ne, %1, %c0_i32_0 : i32
    scf.if %2 {
      %cst_10 = arith.constant 0.000000e+00 : f32
      %12 = vector.broadcast %cst_10 : f32 to vector<64x128xf32>
      %c0_11 = arith.constant 0 : index
      %c0_12 = arith.constant 0 : index
      %13 = vector.load %arg9[%c0_11, %c0_12] : memref<64x128xf32, #tpu.memory_space<vmem>>, vector<64x128xf32>
      tpu.vector_store %arg9[%c0_11, %c0_12], %12 {strides = array<i32>} : memref<64x128xf32, #tpu.memory_space<vmem>>, vector<64x128xf32>,
    } else {
    }
    %c0 = arith.constant 0 : index
    %c0_1 = arith.constant 0 : index
    %3 = vector.load %arg9[%c0, %c0_1] : memref<64x128xf32, #tpu.memory_space<vmem>>, vector<64x128xf32>
    %c0_2 = arith.constant 0 : index
    %c0_3 = arith.constant 0 : index
    %4 = vector.load %arg3[%c0_2, %c0_3] : memref<64x128xbf16, #tpu.memory_space<vmem>>, vector<64x128xbf16>
    %c0_4 = arith.constant 0 : index
    %c0_5 = arith.constant 0 : index
    %5 = vector.load %arg4[%c0_4, %c0_5] : memref<128x128xbf16, #tpu.memory_space<vmem>>, vector<128x128xbf16>
    %cst = arith.constant dense<0.000000e+00> : vector<64x128xf32>
    %6 = tpu.matmul %4, %5, %cst {dimension_numbers = #tpu.dot_dimension_numbers<[1], [0], [0], [1], [0, 0, 1, 1], [], []>} : vector<64x128xbf16>, vector<128x128xbf16>, vector<64x128xf32> -> vector<64x128xf32>
    %7 = arith.addf %3, %6 : vector<64x128xf32>
    %c0_6 = arith.constant 0 : index
    %c0_7 = arith.constant 0 : index
    %8 = vector.load %arg9[%c0_6, %c0_7] : memref<64x128xf32, #tpu.memory_space<vmem>>, vector<64x128xf32>
    tpu.vector_store %arg9[%c0_6, %c0_7], %7 {strides = array<i32>} : memref<64x128xf32, #tpu.memory_space<vmem>>, vector<64x128xf32>,
    %c0_i32_8 = arith.constant 0 : i32
    %9 = arith.cmpi eq, %arg2, %c0_i32_8 : i32
    %10 = arith.extui %9 : i1 to i32
    %c0_i32_9 = arith.constant 0 : i32
    %11 = arith.cmpi ne, %10, %c0_i32_9 : i32
    scf.if %11 {
      %c0_10 = arith.constant 0 : index
      %c0_11 = arith.constant 0 : index
      %12 = vector.load %arg9[%c0_10, %c0_11] : memref<64x128xf32, #tpu.memory_space<vmem>>, vector<64x128xf32>
      %c0_12 = arith.constant 0 : index
      %c0_13 = arith.constant 0 : index
      %13 = vector.load %arg5[%c0_12, %c0_13] : memref<1x128xf32, #tpu.memory_space<vmem>>, vector<1x128xf32>
      %14 = vector.broadcast %13 : vector<1x128xf32> to vector<64x128xf32>
      %15 = arith.addf %12, %14 : vector<64x128xf32>
      %16 = arith.truncf %15 : vector<64x128xf32> to vector<64x128xbf16>
      %c0_14 = arith.constant 0 : index
      %c0_15 = arith.constant 0 : index
      %17 = vector.load %arg6[%c0_14, %c0_15] : memref<64x128xbf16, #tpu.memory_space<vmem>>, vector<64x128xbf16>
      tpu.vector_store %arg6[%c0_14, %c0_15], %16 {strides = array<i32>} : memref<64x128xbf16, #tpu.memory_space<vmem>>, vector<64x128xbf16>,
      %cst_16 = arith.constant dense<0.000000e+00> : vector<128xf32>
      %18 = vector.multi_reduction <add>, %12, %cst_16 [0] : vector<64x128xf32> to vector<128xf32>
      %19 = vector.shape_cast %18 : vector<128xf32> to vector<1x128xf32>
      %20 = vector.shape_cast %19 : vector<1x128xf32> to vector<1x1x128xf32>
      %c0_17 = arith.constant 0 : index
      %c0_18 = arith.constant 0 : index
      %c0_19 = arith.constant 0 : index
      %21 = vector.load %arg7[%c0_17, %c0_18, %c0_19] : memref<1x1x128xf32, #tpu.memory_space<vmem>>, vector<1x1x128xf32>
      tpu.vector_store %arg7[%c0_17, %c0_18, %c0_19], %20 {strides = array<i32>} : memref<1x1x128xf32, #tpu.memory_space<vmem>>, vector<1x1x128xf32>,
      %22 = arith.mulf %12, %12 : vector<64x128xf32>
      %cst_20 = arith.constant dense<0.000000e+00> : vector<128xf32>
      %23 = vector.multi_reduction <add>, %22, %cst_20 [0] : vector<64x128xf32> to vector<128xf32>
      %24 = vector.shape_cast %23 : vector<128xf32> to vector<1x128xf32>
      %25 = vector.shape_cast %24 : vector<1x128xf32> to vector<1x1x128xf32>
      %c0_21 = arith.constant 0 : index
      %c0_22 = arith.constant 0 : index
      %c0_23 = arith.constant 0 : index
      %26 = vector.load %arg8[%c0_21, %c0_22, %c0_23] : memref<1x1x128xf32, #tpu.memory_space<vmem>>, vector<1x1x128xf32>
      tpu.vector_store %arg8[%c0_21, %c0_22, %c0_23], %25 {strides = array<i32>} : memref<1x1x128xf32, #tpu.memory_space<vmem>>, vector<1x1x128xf32>,
    } else {
    }
    return
  }
  func.func @transform_0(%arg0: i32, %arg1: i32, %arg2: i32) -> (i32, i32) {
    %c0_i32 = arith.constant 0 : i32
    return %arg1, %arg2 : i32, i32
  }
  func.func @transform_1(%arg0: i32, %arg1: i32, %arg2: i32) -> (i32, i32) {
    %c0_i32 = arith.constant 0 : i32
    return %arg2, %arg0 : i32, i32
  }
  func.func @transform_2(%arg0: i32, %arg1: i32, %arg2: i32) -> (i32, i32) {
    %c0_i32 = arith.constant 0 : i32
    %c0_i32_0 = arith.constant 0 : i32
    return %c0_i32, %arg0 : i32, i32
  }
  func.func @transform_3(%arg0: i32, %arg1: i32, %arg2: i32) -> (i32, i32) {
    %c0_i32 = arith.constant 0 : i32
    return %arg1, %arg0 : i32, i32
  }
  func.func @transform_4(%arg0: i32, %arg1: i32, %arg2: i32) -> (i32, i32, i32) {
    %c0_i32 = arith.constant 0 : i32
    %c0_i32_0 = arith.constant 0 : i32
    return %arg1, %c0_i32, %arg0 : i32, i32, i32
  }
  func.func @transform_5(%arg0: i32, %arg1: i32, %arg2: i32) -> (i32, i32, i32) {
    %c0_i32 = arith.constant 0 : i32
    %c0_i32_0 = arith.constant 0 : i32
    return %arg1, %c0_i32, %arg0 : i32, i32, i32
  }
}

module attributes {stable_mosaic.version = 11 : i64} {
  func.func @_affine_kernel(%arg0: i32, %arg1: i32, %arg2: memref<64x128xbf16, #tpu.memory_space<vmem>>, %arg3: memref<1x128xf32, #tpu.memory_space<vmem>>, %arg4: memref<1x128xf32, #tpu.memory_space<vmem>>, %arg5: memref<64x128xbf16, #tpu.memory_space<vmem>>) attributes {dimension_semantics = [#tpu.dimension_semantics<parallel>, #tpu.dimension_semantics<parallel>], iteration_bounds = array<i64: 2, 1>, scalar_prefetch = 0 : i64, scratch_operands = 0 : i64, tpu.core_type = #tpu.core_type<tc>, window_params = [{transform_indices = @transform_0, window_bounds = array<i64: 64, 128>}, {transform_indices = @transform_1, window_bounds = array<i64: 1, 128>}, {transform_indices = @transform_2, window_bounds = array<i64: 1, 128>}, {transform_indices = @transform_3, window_bounds = array<i64: 64, 128>}]} {
    %c0 = arith.constant 0 : index
    %c0_0 = arith.constant 0 : index
    %0 = vector.load %arg2[%c0, %c0_0] : memref<64x128xbf16, #tpu.memory_space<vmem>>, vector<64x128xbf16>
    %1 = arith.extf %0 : vector<64x128xbf16> to vector<64x128xf32>
    %c0_1 = arith.constant 0 : index
    %c0_2 = arith.constant 0 : index
    %2 = vector.load %arg3[%c0_1, %c0_2] : memref<1x128xf32, #tpu.memory_space<vmem>>, vector<1x128xf32>
    %3 = vector.broadcast %2 : vector<1x128xf32> to vector<64x128xf32>
    %4 = arith.mulf %1, %3 : vector<64x128xf32>
    %c0_3 = arith.constant 0 : index
    %c0_4 = arith.constant 0 : index
    %5 = vector.load %arg4[%c0_3, %c0_4] : memref<1x128xf32, #tpu.memory_space<vmem>>, vector<1x128xf32>
    %6 = vector.broadcast %5 : vector<1x128xf32> to vector<64x128xf32>
    %7 = arith.addf %4, %6 : vector<64x128xf32>
    %cst = arith.constant 0.000000e+00 : f32
    %8 = vector.broadcast %cst : f32 to vector<64x128xf32>
    %9 = arith.maximumf %7, %8 : vector<64x128xf32>
    %10 = arith.truncf %9 : vector<64x128xf32> to vector<64x128xbf16>
    %c0_5 = arith.constant 0 : index
    %c0_6 = arith.constant 0 : index
    %11 = vector.load %arg5[%c0_5, %c0_6] : memref<64x128xbf16, #tpu.memory_space<vmem>>, vector<64x128xbf16>
    tpu.vector_store %arg5[%c0_5, %c0_6], %10 {strides = array<i32>} : memref<64x128xbf16, #tpu.memory_space<vmem>>, vector<64x128xbf16>,
    return
  }
  func.func @transform_0(%arg0: i32, %arg1: i32) -> (i32, i32) {
    %c0_i32 = arith.constant 0 : i32
    return %arg0, %arg1 : i32, i32
  }
  func.func @transform_1(%arg0: i32, %arg1: i32) -> (i32, i32) {
    %c0_i32 = arith.constant 0 : i32
    %c0_i32_0 = arith.constant 0 : i32
    return %c0_i32, %arg1 : i32, i32
  }
  func.func @transform_2(%arg0: i32, %arg1: i32) -> (i32, i32) {
    %c0_i32 = arith.constant 0 : i32
    %c0_i32_0 = arith.constant 0 : i32
    return %c0_i32, %arg1 : i32, i32
  }
  func.func @transform_3(%arg0: i32, %arg1: i32) -> (i32, i32) {
    %c0_i32 = arith.constant 0 : i32
    return %arg0, %arg1 : i32, i32
  }
}

module attributes {stable_mosaic.version = 11 : i64} {
  func.func @_mm_kernel(%arg0: i32, %arg1: i32, %arg2: i32, %arg3: memref<64x128xbf16, #tpu.memory_space<vmem>>, %arg4: memref<128x128xbf16, #tpu.memory_space<vmem>>, %arg5: memref<1x128xf32, #tpu.memory_space<vmem>>, %arg6: memref<64x128xf32, #tpu.memory_space<vmem>>, %arg7: memref<64x128xf32, #tpu.memory_space<vmem>>) attributes {dimension_semantics = [#tpu.dimension_semantics<parallel>, #tpu.dimension_semantics<parallel>, #tpu.dimension_semantics<arbitrary>], iteration_bounds = array<i64: 1, 2, 1>, scalar_prefetch = 0 : i64, scratch_operands = 1 : i64, tpu.core_type = #tpu.core_type<tc>, window_params = [{transform_indices = @transform_0, window_bounds = array<i64: 64, 128>}, {transform_indices = @transform_1, window_bounds = array<i64: 128, 128>}, {transform_indices = @transform_2, window_bounds = array<i64: 1, 128>}, {transform_indices = @transform_3, window_bounds = array<i64: 64, 128>}]} {
    %c0_i32 = arith.constant 0 : i32
    %0 = arith.cmpi eq, %arg2, %c0_i32 : i32
    %1 = arith.extui %0 : i1 to i32
    %c0_i32_0 = arith.constant 0 : i32
    %2 = arith.cmpi ne, %1, %c0_i32_0 : i32
    scf.if %2 {
      %cst_10 = arith.constant 0.000000e+00 : f32
      %12 = vector.broadcast %cst_10 : f32 to vector<64x128xf32>
      %c0_11 = arith.constant 0 : index
      %c0_12 = arith.constant 0 : index
      %13 = vector.load %arg7[%c0_11, %c0_12] : memref<64x128xf32, #tpu.memory_space<vmem>>, vector<64x128xf32>
      tpu.vector_store %arg7[%c0_11, %c0_12], %12 {strides = array<i32>} : memref<64x128xf32, #tpu.memory_space<vmem>>, vector<64x128xf32>,
    } else {
    }
    %c0 = arith.constant 0 : index
    %c0_1 = arith.constant 0 : index
    %3 = vector.load %arg7[%c0, %c0_1] : memref<64x128xf32, #tpu.memory_space<vmem>>, vector<64x128xf32>
    %c0_2 = arith.constant 0 : index
    %c0_3 = arith.constant 0 : index
    %4 = vector.load %arg3[%c0_2, %c0_3] : memref<64x128xbf16, #tpu.memory_space<vmem>>, vector<64x128xbf16>
    %c0_4 = arith.constant 0 : index
    %c0_5 = arith.constant 0 : index
    %5 = vector.load %arg4[%c0_4, %c0_5] : memref<128x128xbf16, #tpu.memory_space<vmem>>, vector<128x128xbf16>
    %cst = arith.constant dense<0.000000e+00> : vector<64x128xf32>
    %6 = tpu.matmul %4, %5, %cst {dimension_numbers = #tpu.dot_dimension_numbers<[1], [0], [0], [1], [0, 0, 1, 1], [], []>} : vector<64x128xbf16>, vector<128x128xbf16>, vector<64x128xf32> -> vector<64x128xf32>
    %7 = arith.addf %3, %6 : vector<64x128xf32>
    %c0_6 = arith.constant 0 : index
    %c0_7 = arith.constant 0 : index
    %8 = vector.load %arg7[%c0_6, %c0_7] : memref<64x128xf32, #tpu.memory_space<vmem>>, vector<64x128xf32>
    tpu.vector_store %arg7[%c0_6, %c0_7], %7 {strides = array<i32>} : memref<64x128xf32, #tpu.memory_space<vmem>>, vector<64x128xf32>,
    %c0_i32_8 = arith.constant 0 : i32
    %9 = arith.cmpi eq, %arg2, %c0_i32_8 : i32
    %10 = arith.extui %9 : i1 to i32
    %c0_i32_9 = arith.constant 0 : i32
    %11 = arith.cmpi ne, %10, %c0_i32_9 : i32
    scf.if %11 {
      %c0_10 = arith.constant 0 : index
      %c0_11 = arith.constant 0 : index
      %12 = vector.load %arg7[%c0_10, %c0_11] : memref<64x128xf32, #tpu.memory_space<vmem>>, vector<64x128xf32>
      %c0_12 = arith.constant 0 : index
      %c0_13 = arith.constant 0 : index
      %13 = vector.load %arg5[%c0_12, %c0_13] : memref<1x128xf32, #tpu.memory_space<vmem>>, vector<1x128xf32>
      %14 = vector.broadcast %13 : vector<1x128xf32> to vector<64x128xf32>
      %15 = arith.addf %12, %14 : vector<64x128xf32>
      %c0_14 = arith.constant 0 : index
      %c0_15 = arith.constant 0 : index
      %16 = vector.load %arg6[%c0_14, %c0_15] : memref<64x128xf32, #tpu.memory_space<vmem>>, vector<64x128xf32>
      tpu.vector_store %arg6[%c0_14, %c0_15], %15 {strides = array<i32>} : memref<64x128xf32, #tpu.memory_space<vmem>>, vector<64x128xf32>,
    } else {
    }
    return
  }
  func.func @transform_0(%arg0: i32, %arg1: i32, %arg2: i32) -> (i32, i32) {
    %c0_i32 = arith.constant 0 : i32
    return %arg1, %arg2 : i32, i32
  }
  func.func @transform_1(%arg0: i32, %arg1: i32, %arg2: i32) -> (i32, i32) {
    %c0_i32 = arith.constant 0 : i32
    return %arg2, %arg0 : i32, i32
  }
  func.func @transform_2(%arg0: i32, %arg1: i32, %arg2: i32) -> (i32, i32) {
    %c0_i32 = arith.constant 0 : i32
    %c0_i32_0 = arith.constant 0 : i32
    return %c0_i32, %arg0 : i32, i32
  }
  func.func @transform_3(%arg0: i32, %arg1: i32, %arg2: i32) -> (i32, i32) {
    %c0_i32 = arith.constant 0 : i32
    return %arg1, %arg0 : i32, i32
  }
}

</mosaic_0001>

<llo_original>
// kernel: wide_residual_block_forward.5
$region0: #{wide_residual_block_forward.5}
  #allocation0 [shape = 'u32[]', space=smem, size = 0x4, offset = 0x4, fixed_abs, tag = 'smem constant byte address 0x4 - core index']
  #allocation1 [shape = 'u32[72,128]{1,0:T(1,128)}', space=vmem, size = 0x9000, scoped, tag = 'internal scratch']
  %s0 = inlined_call_operand.vmem [shape: f32[512,128], index: 0, kind: input, shape index: {}]
  %s1 = inlined_call_operand.vmem [shape: f32[1,128], index: 1, kind: output, shape index: {0}]
  %s2 = inlined_call_operand.vmem [shape: f32[1,128], index: 2, kind: output, shape index: {1}]
  %3 = xla_tuple %s1, %s2
  %s4 = sld [smem:[#allocation0]]
  $region49: #{wide_residual_block_forward.5} parent=0
    _
  %s6 = ssub.s32 1, %s4
  %s7 = scalar_select 0, %s6, %s4
  loop: start=0, step=1, limit=4
  $region2: #{wide_residual_block_forward.5} parent=0 // loop_pre_header
    _
  $region3: #{wide_residual_block_forward.5} parent=0 // loop_header
    %s9 = sphi 0, %s13
    %p10 = scmp.ge.s32.totalorder %s9, 4
    %s16 = sphi 0, %s28
    %s17 = sphi 0, %s24
    %s18 = sphi 0, %s16
    %s19 = sphi 0, %s17
    %s20 = sphi 0, %s18
    %s21 = sphi 0, %s19
    %s33 = sphi 0, %s35
    %s36 = sphi 0, %s33
    %s37 = sphi 0, %s36
    %s53 = sphi 0, %s37
    %s59 = sphi 0, %s61
    %s62 = sphi 0, %s59
    %s63 = sphi 0, %s62
    %s79 = sphi 0, %s63
    %s85 = sphi 0, %s87
    %s88 = sphi 0, %s85
    %s89 = sphi 0, %s88
    %s105 = sphi 0, %s89
  $region4: #{wide_residual_block_forward.5} parent=0 // loop_header_branch
    %12 = sbr.rel (%p10) target = $region8
  $region5: #{wide_residual_block_forward.5} parent=0 // loop_body
    %s14 = ssub.s32 %s9, 1
    %s15 = ssub.s32 %s9, 2
    %s22 = sadd.s32 1, %s17
    %p23 = scmp.ge.s32.totalorder %s22, 2
    %s24 = scalar_select %p23, 0, %s22
    %s25 = sadd.s32 1, %s16
    %s26 = scalar_select %p23, %s25, %s16
    %p27 = scmp.ge.s32.totalorder %s26, 1
    %s28 = scalar_select %p27, 0, %s26
    %s29 = ssub.s32 %s17, %s24
    %s30 = ssub.s32 %s16, %s28
    %s31 = sor.u32 %s29, %s30
    %p32 = scmp.eq.s32.totalorder %s31, 0
    %s34 = sadd.s32 %s33, 1
    %s35 = scalar_select %p32, %s33, %s34
    %p38 = pneg %p32
    %p39 = scmp.eq.s32.totalorder %s9, 1
    %p40 = por %p38, %p39
    %p41 = scmp.ne.s32.totalorder %s33, %s36
    %p42 = scmp.eq.s32.totalorder %s9, 0
    %p43 = por %p41, %p42
    %p44 = scmp.ne.s32.totalorder %s33, %s36
    %p45 = scmp.eq.s32.totalorder %s14, 1
    %p46 = por %p44, %p45
    %p47 = scmp.ne.s32.totalorder %s36, %s37
    %p48 = scmp.eq.s32.totalorder %s14, 0
    %p49 = por %p47, %p48
    %p50 = scmp.ne.s32.totalorder %s36, %s37
    %p51 = scmp.eq.s32.totalorder %s15, 1
    %p52 = por %p50, %p51
    %p54 = scmp.ne.s32.totalorder %s37, %s53
    %p55 = scmp.eq.s32.totalorder %s15, 0
    %p56 = por %p54, %p55
    %s57 = ssub.s32 %s16, %s28
    %p58 = scmp.eq.s32.totalorder %s57, 0
    %s60 = sadd.s32 %s59, 1
    %s61 = scalar_select %p58, %s59, %s60
    %p64 = pneg %p58
    %p65 = scmp.eq.s32.totalorder %s9, 1
    %p66 = por %p64, %p65
    %p67 = scmp.ne.s32.totalorder %s59, %s62
    %p68 = scmp.eq.s32.totalorder %s9, 0
    %p69 = por %p67, %p68
    %p70 = scmp.ne.s32.totalorder %s59, %s62
    %p71 = scmp.eq.s32.totalorder %s14, 1
    %p72 = por %p70, %p71
    %p73 = scmp.ne.s32.totalorder %s62, %s63
    %p74 = scmp.eq.s32.totalorder %s14, 0
    %p75 = por %p73, %p74
    %p76 = scmp.ne.s32.totalorder %s62, %s63
    %p77 = scmp.eq.s32.totalorder %s15, 1
    %p78 = por %p76, %p77
    %p80 = scmp.ne.s32.totalorder %s63, %s79
    %p81 = scmp.eq.s32.totalorder %s15, 0
    %p82 = por %p80, %p81
    %s83 = ssub.s32 %s16, %s28
    %p84 = scmp.eq.s32.totalorder %s83, 0
    %s86 = sadd.s32 %s85, 1
    %s87 = scalar_select %p84, %s85, %s86
    %p90 = pneg %p84
    %p91 = scmp.eq.s32.totalorder %s9, 1
    %p92 = por %p90, %p91
    %p93 = scmp.ne.s32.totalorder %s85, %s88
    %p94 = scmp.eq.s32.totalorder %s9, 0
    %p95 = por %p93, %p94
    %p96 = scmp.ne.s32.totalorder %s85, %s88
    %p97 = scmp.eq.s32.totalorder %s14, 1
    %p98 = por %p96, %p97
    %p99 = scmp.ne.s32.totalorder %s88, %s89
    %p100 = scmp.eq.s32.totalorder %s14, 0
    %p101 = por %p99, %p100
    %p102 = scmp.ne.s32.totalorder %s88, %s89
    %p103 = scmp.eq.s32.totalorder %s15, 1
    %p104 = por %p102, %p103
    %p106 = scmp.ne.s32.totalorder %s89, %s105
    %p107 = scmp.eq.s32.totalorder %s15, 0
    %p108 = por %p106, %p107
    %p109 = scmp.le.s32.totalorder 1, %s9
    %p110 = scmp.lt.s32.totalorder %s9, 3
    %p111 = pnand %p109, %p110
    %p112 = pneg %p111
    // Predicated region
    $region9: #{wide_residual_block_forward.5} parent=5 // pred_check
      _
    $region10: #{wide_residual_block_forward.5} parent=5 // pred_check_branch
      %114 = sbr.rel (%p111) target = $region12
    $region11: #{wide_residual_block_forward.5} parent=5 // pred_region
      %s115 = ssub.s32 %s9, 1
    $region12: #{wide_residual_block_forward.5} parent=5 // pred_fallthru
      _
    %p116 = scmp.lt.s32.totalorder %s9, 2
    // Predicated region
    $region13: #{wide_residual_block_forward.5} parent=5 // pred_check
      %p117 = pneg %p116
    $region14: #{wide_residual_block_forward.5} parent=5 // pred_check_branch
      %119 = sbr.rel (%p117) target = $region16
    $region15: #{wide_residual_block_forward.5} parent=5 // pred_region
      // Predicated region
      $region17: #{wide_residual_block_forward.5} parent=15 // pred_check
        %p120 = pneg %p43
      $region18: #{wide_residual_block_forward.5} parent=15 // pred_check_branch
        %122 = sbr.rel (%p120) target = $region20
      $region19: #{wide_residual_block_forward.5} parent=15 // pred_region
        %s123 = smul.u32 32, %s17
        %p124 = scmp.lt.s32.totalorder %s123, 63
        %s125 = scalar_select %p124, %s123, 63
        %p126 = scmp.lt.s32.totalorder %s16, 0
        %s127 = scalar_select %p126, %s16, 0
        %s128 = sadd.s32 %s127, %s125
        %s129 = smul.addr %s128, 8
        %s130 = scalar_lea.vmem %s0, %s129
        %s131 = smul.u32 32, %s17
      $region20: #{wide_residual_block_forward.5} parent=15 // pred_fallthru
        _
    $region16: #{wide_residual_block_forward.5} parent=5 // pred_fallthru
      _
    %p132 = scmp.le.s32.totalorder 1, %s9
    %p133 = scmp.lt.s32.totalorder %s9, 3
    %p134 = pnand %p132, %p133
    %p135 = pneg %p134
    // Predicated region
    $region21: #{wide_residual_block_forward.5} parent=5 // pred_check
      _
    $region22: #{wide_residual_block_forward.5} parent=5 // pred_check_branch
      %137 = sbr.rel (%p134) target = $region24
    $region23: #{wide_residual_block_forward.5} parent=5 // pred_region
      %s138 = ssub.s32 %s9, 1
      %s139 = smul.u32 32, %s19
      %p140 = scmp.lt.s32.totalorder %s139, 63
      %s141 = scalar_select %p140, %s139, 63
      %p142 = scmp.lt.s32.totalorder %s18, 0
      %s143 = scalar_select %p142, %s18, 0
      %s144 = sadd.s32 %s143, %s141
      %s145 = smul.addr %s144, 8
      %s146 = scalar_lea.vmem %s0, %s145
      %p147 = pneg %p49
      %p148 = pneg %p46
      %p149 = pneg %p75
      %p150 = pneg %p72
      %p151 = scmp.lt.s32.totalorder %s18, 0
      %s152 = scalar_select %p151, %s18, 0
      %s153 = scalar_lea.vmem %s1, %s152
      %p154 = pneg %p101
      %p155 = pneg %p98
      %p156 = scmp.lt.s32.totalorder %s18, 0
      %s157 = scalar_select %p156, %s18, 0
      %s158 = scalar_lea.vmem %s2, %s157
      %s159 = smul.u32 32, %s19
      %p160 = scmp.lt.s32.totalorder %s159, 63
      %s161 = scalar_select %p160, %s159, 63
      %p162 = scmp.lt.s32.totalorder %s18, 0
      %s163 = scalar_select %p162, %s18, 0
      %s164 = sadd.s32 %s163, %s161
      %s165 = smul.addr %s164, 8
      %s166 = scalar_lea.vmem %s0, %s165
      %s167 = smul.u32 32, %s19
      %p168 = scmp.lt.s32.totalorder %s18, 0
      %s169 = scalar_select %p168, %s18, 0
      %s170 = scalar_lea.vmem %s1, %s169
      %p171 = scmp.lt.s32.totalorder %s18, 0
      %s172 = scalar_select %p171, %s18, 0
      %s173 = scalar_lea.vmem %s2, %s172
      %p174 = scmp.eq.s32.totalorder %s19, 0
      // Predicated region
      $region25: #{wide_residual_block_forward.5} parent=23 // pred_check
        %p175 = pneg %p174
      $region26: #{wide_residual_block_forward.5} parent=23 // pred_check_branch
        %177 = sbr.rel (%p175) target = $region28
      $region27: #{wide_residual_block_forward.5} parent=23 // pred_region
        %178 = vst [vmem:[%s170] sm:$0x1] 0.0
        %179 = vst [vmem:[%s173] sm:$0x1] 0.0
      $region28: #{wide_residual_block_forward.5} parent=23 // pred_fallthru
        _
      %v180 = vld [vmem:[%s166] sm:$0xff]
      %v181 = vld [vmem:[%s166 + $0x8] sm:$0xff]
      %v182 = vld [vmem:[%s166 + $0x10] sm:$0xff]
      %v183 = vld [vmem:[%s166 + $0x18] sm:$0xff]
      %v184 = vld [vmem:[%s166 + $0x20] sm:$0xff]
      %v185 = vld [vmem:[%s166 + $0x28] sm:$0xff]
      %v186 = vld [vmem:[%s166 + $0x30] sm:$0xff]
      %v187 = vld [vmem:[%s166 + $0x38] sm:$0xff]
      %v188 = vld [vmem:[%s166 + $0x40] sm:$0xff]
      %v189 = vld [vmem:[%s166 + $0x48] sm:$0xff]
      %v190 = vld [vmem:[%s166 + $0x50] sm:$0xff]
      %v191 = vld [vmem:[%s166 + $0x58] sm:$0xff]
      %v192 = vld [vmem:[%s166 + $0x60] sm:$0xff]
      %v193 = vld [vmem:[%s166 + $0x68] sm:$0xff]
      %v194 = vld [vmem:[%s166 + $0x70] sm:$0xff]
      %v195 = vld [vmem:[%s166 + $0x78] sm:$0xff]
      %v196 = vld [vmem:[%s166 + $0x80] sm:$0xff]
      %v197 = vld [vmem:[%s166 + $0x88] sm:$0xff]
      %v198 = vld [vmem:[%s166 + $0x90] sm:$0xff]
      %v199 = vld [vmem:[%s166 + $0x98] sm:$0xff]
      %v200 = vld [vmem:[%s166 + $0xa0] sm:$0xff]
      %v201 = vld [vmem:[%s166 + $0xa8] sm:$0xff]
      %v202 = vld [vmem:[%s166 + $0xb0] sm:$0xff]
      %v203 = vld [vmem:[%s166 + $0xb8] sm:$0xff]
      %v204 = vld [vmem:[%s166 + $0xc0] sm:$0xff]
      %v205 = vld [vmem:[%s166 + $0xc8] sm:$0xff]
      %v206 = vld [vmem:[%s166 + $0xd0] sm:$0xff]
      %v207 = vld [vmem:[%s166 + $0xd8] sm:$0xff]
      %v208 = vld [vmem:[%s166 + $0xe0] sm:$0xff]
      %v209 = vld [vmem:[%s166 + $0xe8] sm:$0xff]
      %v210 = vld [vmem:[%s166 + $0xf0] sm:$0xff]
      %v211 = vld [vmem:[%s166 + $0xf8] sm:$0xff]
      %v212 = vld [vmem:[%s170] sm:$0x1]
      %v213 = vadd.f32 %v180, %v181
      %v214 = vadd.f32 %v213, %v182
      %v215 = vadd.f32 %v214, %v183
      %v216 = vadd.f32 %v215, %v184
      %v217 = vadd.f32 %v216, %v185
      %v218 = vadd.f32 %v217, %v186
      %v219 = vadd.f32 %v218, %v187
      %v220 = vadd.f32 %v219, %v188
      %v221 = vadd.f32 %v220, %v189
      %v222 = vadd.f32 %v221, %v190
      %v223 = vadd.f32 %v222, %v191
      %v224 = vadd.f32 %v223, %v192
      %v225 = vadd.f32 %v224, %v193
      %v226 = vadd.f32 %v225, %v194
      %v227 = vadd.f32 %v226, %v195
      %v228 = vadd.f32 %v227, %v196
      %v229 = vadd.f32 %v228, %v197
      %v230 = vadd.f32 %v229, %v198
      %v231 = vadd.f32 %v230, %v199
      %v232 = vadd.f32 %v231, %v200
      %v233 = vadd.f32 %v232, %v201
      %v234 = vadd.f32 %v233, %v202
      %v235 = vadd.f32 %v234, %v203
      %v236 = vadd.f32 %v235, %v204
      %v237 = vadd.f32 %v236, %v205
      %v238 = vadd.f32 %v237, %v206
      %v239 = vadd.f32 %v238, %v207
      %v240 = vadd.f32 %v239, %v208
      %v241 = vadd.f32 %v240, %v209
      %v242 = vadd.f32 %v241, %v210
      %v243 = vadd.f32 %v242, %v211
      %v244 = vrot.slane %v243, 4
      %v245 = vadd.f32 %v243, %v244
      %v246 = vrot.slane %v245, 2
      %v247 = vadd.f32 %v245, %v246
      %v248 = vrot.slane %v247, 1
      %v249 = vadd.f32 %v247, %v248
      %v250 = vadd.f32 %v212, %v249
      %251 = vst [vmem:[%s170] sm:$0x1] %v250
      %v252 = vld [vmem:[%s173] sm:$0x1]
      %v253 = vmul.f32 %v180, %v180
      %v254 = vmul.f32 %v181, %v181
      %v255 = vmul.f32 %v182, %v182
      %v256 = vmul.f32 %v183, %v183
      %v257 = vmul.f32 %v184, %v184
      %v258 = vmul.f32 %v185, %v185
      %v259 = vmul.f32 %v186, %v186
      %v260 = vmul.f32 %v187, %v187
      %v261 = vmul.f32 %v188, %v188
      %v262 = vmul.f32 %v189, %v189
      %v263 = vmul.f32 %v190, %v190
      %v264 = vmul.f32 %v191, %v191
      %v265 = vmul.f32 %v192, %v192
      %v266 = vmul.f32 %v193, %v193
      %v267 = vmul.f32 %v194, %v194
      %v268 = vmul.f32 %v195, %v195
      %v269 = vmul.f32 %v196, %v196
      %v270 = vmul.f32 %v197, %v197
      %v271 = vmul.f32 %v198, %v198
      %v272 = vmul.f32 %v199, %v199
      %v273 = vmul.f32 %v200, %v200
      %v274 = vmul.f32 %v201, %v201
      %v275 = vmul.f32 %v202, %v202
      %v276 = vmul.f32 %v203, %v203
      %v277 = vmul.f32 %v204, %v204
      %v278 = vmul.f32 %v205, %v205
      %v279 = vmul.f32 %v206, %v206
      %v280 = vmul.f32 %v207, %v207
      %v281 = vmul.f32 %v208, %v208
      %v282 = vmul.f32 %v209, %v209
      %v283 = vmul.f32 %v210, %v210
      %v284 = vmul.f32 %v211, %v211
      %v285 = vadd.f32 %v253, %v254
      %v286 = vadd.f32 %v285, %v255
      %v287 = vadd.f32 %v286, %v256
      %v288 = vadd.f32 %v287, %v257
      %v289 = vadd.f32 %v288, %v258
      %v290 = vadd.f32 %v289, %v259
      %v291 = vadd.f32 %v290, %v260
      %v292 = vadd.f32 %v291, %v261
      %v293 = vadd.f32 %v292, %v262
      %v294 = vadd.f32 %v293, %v263
      %v295 = vadd.f32 %v294, %v264
      %v296 = vadd.f32 %v295, %v265
      %v297 = vadd.f32 %v296, %v266
      %v298 = vadd.f32 %v297, %v267
      %v299 = vadd.f32 %v298, %v268
      %v300 = vadd.f32 %v299, %v269
      %v301 = vadd.f32 %v300, %v270
      %v302 = vadd.f32 %v301, %v271
      %v303 = vadd.f32 %v302, %v272
      %v304 = vadd.f32 %v303, %v273
      %v305 = vadd.f32 %v304, %v274
      %v306 = vadd.f32 %v305, %v275
      %v307 = vadd.f32 %v306, %v276
      %v308 = vadd.f32 %v307, %v277
      %v309 = vadd.f32 %v308, %v278
      %v310 = vadd.f32 %v309, %v279
      %v311 = vadd.f32 %v310, %v280
      %v312 = vadd.f32 %v311, %v281
      %v313 = vadd.f32 %v312, %v282
      %v314 = vadd.f32 %v313, %v283
      %v315 = vadd.f32 %v314, %v284
      %v316 = vrot.slane %v315, 4
      %v317 = vadd.f32 %v315, %v316
      %v318 = vrot.slane %v317, 2
      %v319 = vadd.f32 %v317, %v318
      %v320 = vrot.slane %v319, 1
      %v321 = vadd.f32 %v319, %v320
      %v322 = vadd.f32 %v252, %v321
      %323 = vst [vmem:[%s173] sm:$0x1] %v322
      %p324 = scmp.lt.s32.totalorder %s18, 0
      %s325 = scalar_select %p324, %s18, 0
      %s326 = scalar_lea.vmem %s1, %s325
      %p327 = scmp.lt.s32.totalorder %s18, 0
      %s328 = scalar_select %p327, %s18, 0
      %s329 = scalar_lea.vmem %s2, %s328
      // Predicated region
      $region29: #{wide_residual_block_forward.5} parent=23 // pred_check
        %p330 = pneg %p72
      $region30: #{wide_residual_block_forward.5} parent=23 // pred_check_branch
        %332 = sbr.rel (%p330) target = $region32
      $region31: #{wide_residual_block_forward.5} parent=23 // pred_region
        _
      $region32: #{wide_residual_block_forward.5} parent=23 // pred_fallthru
        _
      // Predicated region
      $region33: #{wide_residual_block_forward.5} parent=23 // pred_check
        %p333 = pneg %p98
      $region34: #{wide_residual_block_forward.5} parent=23 // pred_check_branch
        %335 = sbr.rel (%p333) target = $region36
      $region35: #{wide_residual_block_forward.5} parent=23 // pred_region
        _
      $region36: #{wide_residual_block_forward.5} parent=23 // pred_fallthru
        _
      // Predicated region
      $region37: #{wide_residual_block_forward.5} parent=23 // pred_check
        %p336 = pneg %p72
      $region38: #{wide_residual_block_forward.5} parent=23 // pred_check_branch
        %338 = sbr.rel (%p336) target = $region40
      $region39: #{wide_residual_block_forward.5} parent=23 // pred_region
        %p339 = scmp.lt.s32.totalorder %s18, 0
        %s340 = scalar_select %p339, %s18, 0
        %s341 = scalar_lea.vmem %s1, %s340
      $region40: #{wide_residual_block_forward.5} parent=23 // pred_fallthru
        _
      // Predicated region
      $region41: #{wide_residual_block_forward.5} parent=23 // pred_check
        %p342 = pneg %p98
      $region42: #{wide_residual_block_forward.5} parent=23 // pred_check_branch
        %344 = sbr.rel (%p342) target = $region44
      $region43: #{wide_residual_block_forward.5} parent=23 // pred_region
        %p345 = scmp.lt.s32.totalorder %s18, 0
        %s346 = scalar_select %p345, %s18, 0
        %s347 = scalar_lea.vmem %s2, %s346
      $region44: #{wide_residual_block_forward.5} parent=23 // pred_fallthru
        _
    $region24: #{wide_residual_block_forward.5} parent=5 // pred_fallthru
      _
    %p348 = scmp.le.s32.totalorder 2, %s9
    // Predicated region
    $region45: #{wide_residual_block_forward.5} parent=5 // pred_check
      %p349 = pneg %p348
    $region46: #{wide_residual_block_forward.5} parent=5 // pred_check_branch
      %351 = sbr.rel (%p349) target = $region48
    $region47: #{wide_residual_block_forward.5} parent=5 // pred_region
      %s352 = ssub.s32 %s9, 2
    $region48: #{wide_residual_block_forward.5} parent=5 // pred_fallthru
      _
  $region6: #{wide_residual_block_forward.5} parent=0 // loop_footer
    %s13 = sadd.s32 1, %s9
  $region7: #{wide_residual_block_forward.5} parent=0 // loop_footer_branch
    %8 = sbr.rel target = $region3
  $region8: #{wide_residual_block_forward.5} parent=0 // loop_exit
    _

// kernel: wide_residual_block_forward.6
$region0: #{wide_residual_block_forward.6}
  #allocation0 [shape = 'u32[]', space=smem, size = 0x4, offset = 0x4, fixed_abs, tag = 'smem constant byte address 0x4 - core index']
  #allocation1 [shape = 'u32[72,128]{1,0:T(1,128)}', space=vmem, size = 0x9000, scoped, tag = 'internal scratch']
  %s0 = inlined_call_operand.vmem [shape: f32[512,128], index: 0, kind: input, shape index: {}]
  %s1 = inlined_call_operand.vmem [shape: f32[1,128], index: 1, kind: input, shape index: {}]
  %s2 = inlined_call_operand.vmem [shape: f32[1,128], index: 2, kind: input, shape index: {}]
  %s3 = inlined_call_operand.vmem [shape: bf16[512,128], index: 3, kind: output, shape index: {}]
  %s4 = sld [smem:[#allocation0]]
  $region45: #{wide_residual_block_forward.6} parent=0
    _
  %s6 = ssub.s32 1, %s4
  %s7 = scalar_select 0, %s6, %s4
  loop: start=0, step=1, limit=4
  $region2: #{wide_residual_block_forward.6} parent=0 // loop_pre_header
    _
  $region3: #{wide_residual_block_forward.6} parent=0 // loop_header
    %s9 = sphi 0, %s13
    %p10 = scmp.ge.s32.totalorder %s9, 4
    %s16 = sphi 0, %s28
    %s17 = sphi 0, %s24
    %s18 = sphi 0, %s16
    %s19 = sphi 0, %s17
    %s20 = sphi 0, %s18
    %s21 = sphi 0, %s19
    %s33 = sphi 0, %s35
    %s36 = sphi 0, %s33
    %s37 = sphi 0, %s36
    %s53 = sphi 0, %s37
    %s59 = sphi 0, %s61
    %s62 = sphi 0, %s59
    %s63 = sphi 0, %s62
    %s79 = sphi 0, %s63
    %s85 = sphi 0, %s87
    %s88 = sphi 0, %s85
    %s89 = sphi 0, %s88
    %s105 = sphi 0, %s89
    %s113 = sphi 0, %s115
    %s116 = sphi 0, %s113
    %s117 = sphi 0, %s116
    %s133 = sphi 0, %s117
  $region4: #{wide_residual_block_forward.6} parent=0 // loop_header_branch
    %12 = sbr.rel (%p10) target = $region8
  $region5: #{wide_residual_block_forward.6} parent=0 // loop_body
    %s14 = ssub.s32 %s9, 1
    %s15 = ssub.s32 %s9, 2
    %s22 = sadd.s32 1, %s17
    %p23 = scmp.ge.s32.totalorder %s22, 1
    %s24 = scalar_select %p23, 0, %s22
    %s25 = sadd.s32 1, %s16
    %s26 = scalar_select %p23, %s25, %s16
    %p27 = scmp.ge.s32.totalorder %s26, 2
    %s28 = scalar_select %p27, 0, %s26
    %s29 = ssub.s32 %s16, %s28
    %s30 = ssub.s32 %s17, %s24
    %s31 = sor.u32 %s29, %s30
    %p32 = scmp.eq.s32.totalorder %s31, 0
    %s34 = sadd.s32 %s33, 1
    %s35 = scalar_select %p32, %s33, %s34
    %p38 = pneg %p32
    %p39 = scmp.eq.s32.totalorder %s9, 1
    %p40 = por %p38, %p39
    %p41 = scmp.ne.s32.totalorder %s33, %s36
    %p42 = scmp.eq.s32.totalorder %s9, 0
    %p43 = por %p41, %p42
    %p44 = scmp.ne.s32.totalorder %s33, %s36
    %p45 = scmp.eq.s32.totalorder %s14, 1
    %p46 = por %p44, %p45
    %p47 = scmp.ne.s32.totalorder %s36, %s37
    %p48 = scmp.eq.s32.totalorder %s14, 0
    %p49 = por %p47, %p48
    %p50 = scmp.ne.s32.totalorder %s36, %s37
    %p51 = scmp.eq.s32.totalorder %s15, 1
    %p52 = por %p50, %p51
    %p54 = scmp.ne.s32.totalorder %s37, %s53
    %p55 = scmp.eq.s32.totalorder %s15, 0
    %p56 = por %p54, %p55
    %s57 = ssub.s32 %s17, %s24
    %p58 = scmp.eq.s32.totalorder %s57, 0
    %s60 = sadd.s32 %s59, 1
    %s61 = scalar_select %p58, %s59, %s60
    %p64 = pneg %p58
    %p65 = scmp.eq.s32.totalorder %s9, 1
    %p66 = por %p64, %p65
    %p67 = scmp.ne.s32.totalorder %s59, %s62
    %p68 = scmp.eq.s32.totalorder %s9, 0
    %p69 = por %p67, %p68
    %p70 = scmp.ne.s32.totalorder %s59, %s62
    %p71 = scmp.eq.s32.totalorder %s14, 1
    %p72 = por %p70, %p71
    %p73 = scmp.ne.s32.totalorder %s62, %s63
    %p74 = scmp.eq.s32.totalorder %s14, 0
    %p75 = por %p73, %p74
    %p76 = scmp.ne.s32.totalorder %s62, %s63
    %p77 = scmp.eq.s32.totalorder %s15, 1
    %p78 = por %p76, %p77
    %p80 = scmp.ne.s32.totalorder %s63, %s79
    %p81 = scmp.eq.s32.totalorder %s15, 0
    %p82 = por %p80, %p81
    %s83 = ssub.s32 %s17, %s24
    %p84 = scmp.eq.s32.totalorder %s83, 0
    %s86 = sadd.s32 %s85, 1
    %s87 = scalar_select %p84, %s85, %s86
    %p90 = pneg %p84
    %p91 = scmp.eq.s32.totalorder %s9, 1
    %p92 = por %p90, %p91
    %p93 = scmp.ne.s32.totalorder %s85, %s88
    %p94 = scmp.eq.s32.totalorder %s9, 0
    %p95 = por %p93, %p94
    %p96 = scmp.ne.s32.totalorder %s85, %s88
    %p97 = scmp.eq.s32.totalorder %s14, 1
    %p98 = por %p96, %p97
    %p99 = scmp.ne.s32.totalorder %s88, %s89
    %p100 = scmp.eq.s32.totalorder %s14, 0
    %p101 = por %p99, %p100
    %p102 = scmp.ne.s32.totalorder %s88, %s89
    %p103 = scmp.eq.s32.totalorder %s15, 1
    %p104 = por %p102, %p103
    %p106 = scmp.ne.s32.totalorder %s89, %s105
    %p107 = scmp.eq.s32.totalorder %s15, 0
    %p108 = por %p106, %p107
    %s109 = ssub.s32 %s16, %s28
    %s110 = ssub.s32 %s17, %s24
    %s111 = sor.u32 %s109, %s110
    %p112 = scmp.eq.s32.totalorder %s111, 0
    %s114 = sadd.s32 %s113, 1
    %s115 = scalar_select %p112, %s113, %s114
    %p118 = pneg %p112
    %p119 = scmp.eq.s32.totalorder %s9, 1
    %p120 = por %p118, %p119
    %p121 = scmp.ne.s32.totalorder %s113, %s116
    %p122 = scmp.eq.s32.totalorder %s9, 0
    %p123 = por %p121, %p122
    %p124 = scmp.ne.s32.totalorder %s113, %s116
    %p125 = scmp.eq.s32.totalorder %s14, 1
    %p126 = por %p124, %p125
    %p127 = scmp.ne.s32.totalorder %s116, %s117
    %p128 = scmp.eq.s32.totalorder %s14, 0
    %p129 = por %p127, %p128
    %p130 = scmp.ne.s32.totalorder %s116, %s117
    %p131 = scmp.eq.s32.totalorder %s15, 1
    %p132 = por %p130, %p131
    %p134 = scmp.ne.s32.totalorder %s117, %s133
    %p135 = scmp.eq.s32.totalorder %s15, 0
    %p136 = por %p134, %p135
    %p137 = scmp.le.s32.totalorder 1, %s9
    %p138 = scmp.lt.s32.totalorder %s9, 3
    %p139 = pnand %p137, %p138
    %p140 = pneg %p139
    // Predicated region
    $region9: #{wide_residual_block_forward.6} parent=5 // pred_check
      _
    $region10: #{wide_residual_block_forward.6} parent=5 // pred_check_branch
      %142 = sbr.rel (%p139) target = $region12
    $region11: #{wide_residual_block_forward.6} parent=5 // pred_region
      %s143 = ssub.s32 %s9, 1
      // Predicated region
      $region13: #{wide_residual_block_forward.6} parent=11 // pred_check
        %p144 = pneg %p75
      $region14: #{wide_residual_block_forward.6} parent=11 // pred_check_branch
        %146 = sbr.rel (%p144) target = $region16
      $region15: #{wide_residual_block_forward.6} parent=11 // pred_region
        %p147 = scmp.lt.s32.totalorder %s19, 0
        %s148 = scalar_select %p147, %s19, 0
        %s149 = scalar_lea.vmem %s1, %s148
      $region16: #{wide_residual_block_forward.6} parent=11 // pred_fallthru
        _
      // Predicated region
      $region17: #{wide_residual_block_forward.6} parent=11 // pred_check
        %p150 = pneg %p101
      $region18: #{wide_residual_block_forward.6} parent=11 // pred_check_branch
        %152 = sbr.rel (%p150) target = $region20
      $region19: #{wide_residual_block_forward.6} parent=11 // pred_region
        %p153 = scmp.lt.s32.totalorder %s19, 0
        %s154 = scalar_select %p153, %s19, 0
        %s155 = scalar_lea.vmem %s2, %s154
      $region20: #{wide_residual_block_forward.6} parent=11 // pred_fallthru
        _
    $region12: #{wide_residual_block_forward.6} parent=5 // pred_fallthru
      _
    %p156 = scmp.lt.s32.totalorder %s9, 2
    // Predicated region
    $region21: #{wide_residual_block_forward.6} parent=5 // pred_check
      %p157 = pneg %p156
    $region22: #{wide_residual_block_forward.6} parent=5 // pred_check_branch
      %159 = sbr.rel (%p157) target = $region24
    $region23: #{wide_residual_block_forward.6} parent=5 // pred_region
      // Predicated region
      $region25: #{wide_residual_block_forward.6} parent=23 // pred_check
        %p160 = pneg %p43
      $region26: #{wide_residual_block_forward.6} parent=23 // pred_check_branch
        %162 = sbr.rel (%p160) target = $region28
      $region27: #{wide_residual_block_forward.6} parent=23 // pred_region
        %s163 = smul.u32 32, %s16
        %p164 = scmp.lt.s32.totalorder %s163, 63
        %s165 = scalar_select %p164, %s163, 63
        %p166 = scmp.lt.s32.totalorder %s17, 0
        %s167 = scalar_select %p166, %s17, 0
        %s168 = sadd.s32 %s167, %s165
        %s169 = smul.addr %s168, 8
        %s170 = scalar_lea.vmem %s0, %s169
        %s171 = smul.u32 32, %s16
      $region28: #{wide_residual_block_forward.6} parent=23 // pred_fallthru
        _
    $region24: #{wide_residual_block_forward.6} parent=5 // pred_fallthru
      _
    %p172 = scmp.le.s32.totalorder 1, %s9
    %p173 = scmp.lt.s32.totalorder %s9, 3
    %p174 = pnand %p172, %p173
    %p175 = pneg %p174
    // Predicated region
    $region29: #{wide_residual_block_forward.6} parent=5 // pred_check
      _
    $region30: #{wide_residual_block_forward.6} parent=5 // pred_check_branch
      %177 = sbr.rel (%p174) target = $region32
    $region31: #{wide_residual_block_forward.6} parent=5 // pred_region
      %s178 = ssub.s32 %s9, 1
      %s179 = smul.u32 32, %s18
      %p180 = scmp.lt.s32.totalorder %s179, 63
      %s181 = scalar_select %p180, %s179, 63
      %p182 = scmp.lt.s32.totalorder %s19, 0
      %s183 = scalar_select %p182, %s19, 0
      %s184 = sadd.s32 %s183, %s181
      %s185 = smul.addr %s184, 8
      %s186 = scalar_lea.vmem %s0, %s185
      %p187 = pneg %p49
      %p188 = pneg %p46
      %p189 = scmp.lt.s32.totalorder %s19, 0
      %s190 = scalar_select %p189, %s19, 0
      %s191 = scalar_lea.vmem %s1, %s190
      %p192 = pneg %p75
      %p193 = pneg %p72
      %p194 = scmp.lt.s32.totalorder %s19, 0
      %s195 = scalar_select %p194, %s19, 0
      %s196 = scalar_lea.vmem %s2, %s195
      %p197 = pneg %p101
      %p198 = pneg %p98
      %p199 = pneg %p129
      %p200 = pneg %p126
      %s201 = smul.u32 32, %s18
      %p202 = scmp.lt.s32.totalorder %s201, 63
      %s203 = scalar_select %p202, %s201, 63
      %p204 = scmp.lt.s32.totalorder %s19, 0
      %s205 = scalar_select %p204, %s19, 0
      %s206 = sadd.s32 %s205, %s203
      %s207 = smul.addr %s206, 4
      %s208 = scalar_lea.vmem %s3, %s207
      %s209 = smul.u32 32, %s18
      %p210 = scmp.lt.s32.totalorder %s209, 63
      %s211 = scalar_select %p210, %s209, 63
      %p212 = scmp.lt.s32.totalorder %s19, 0
      %s213 = scalar_select %p212, %s19, 0
      %s214 = sadd.s32 %s213, %s211
      %s215 = smul.addr %s214, 8
      %s216 = scalar_lea.vmem %s0, %s215
      %s217 = smul.u32 32, %s18
      %p218 = scmp.lt.s32.totalorder %s19, 0
      %s219 = scalar_select %p218, %s19, 0
      %s220 = scalar_lea.vmem %s1, %s219
      %p221 = scmp.lt.s32.totalorder %s19, 0
      %s222 = scalar_select %p221, %s19, 0
      %s223 = scalar_lea.vmem %s2, %s222
      %s224 = smul.u32 32, %s18
      %p225 = scmp.lt.s32.totalorder %s224, 63
      %s226 = scalar_select %p225, %s224, 63
      %p227 = scmp.lt.s32.totalorder %s19, 0
      %s228 = scalar_select %p227, %s19, 0
      %s229 = sadd.s32 %s228, %s226
      %s230 = smul.addr %s229, 4
      %s231 = scalar_lea.vmem %s3, %s230
      %s232 = smul.u32 32, %s18
      %v233 = vld [vmem:[%s216] sm:$0xff]
      %v234 = vld [vmem:[%s216 + $0x8] sm:$0xff]
      %v235 = vld [vmem:[%s216 + $0x10] sm:$0xff]
      %v236 = vld [vmem:[%s216 + $0x18] sm:$0xff]
      %v237 = vld [vmem:[%s216 + $0x20] sm:$0xff]
      %v238 = vld [vmem:[%s216 + $0x28] sm:$0xff]
      %v239 = vld [vmem:[%s216 + $0x30] sm:$0xff]
      %v240 = vld [vmem:[%s216 + $0x38] sm:$0xff]
      %v241 = vld [vmem:[%s216 + $0x40] sm:$0xff]
      %v242 = vld [vmem:[%s216 + $0x48] sm:$0xff]
      %v243 = vld [vmem:[%s216 + $0x50] sm:$0xff]
      %v244 = vld [vmem:[%s216 + $0x58] sm:$0xff]
      %v245 = vld [vmem:[%s216 + $0x60] sm:$0xff]
      %v246 = vld [vmem:[%s216 + $0x68] sm:$0xff]
      %v247 = vld [vmem:[%s216 + $0x70] sm:$0xff]
      %v248 = vld [vmem:[%s216 + $0x78] sm:$0xff]
      %v249 = vld [vmem:[%s216 + $0x80] sm:$0xff]
      %v250 = vld [vmem:[%s216 + $0x88] sm:$0xff]
      %v251 = vld [vmem:[%s216 + $0x90] sm:$0xff]
      %v252 = vld [vmem:[%s216 + $0x98] sm:$0xff]
      %v253 = vld [vmem:[%s216 + $0xa0] sm:$0xff]
      %v254 = vld [vmem:[%s216 + $0xa8] sm:$0xff]
      %v255 = vld [vmem:[%s216 + $0xb0] sm:$0xff]
      %v256 = vld [vmem:[%s216 + $0xb8] sm:$0xff]
      %v257 = vld [vmem:[%s216 + $0xc0] sm:$0xff]
      %v258 = vld [vmem:[%s216 + $0xc8] sm:$0xff]
      %v259 = vld [vmem:[%s216 + $0xd0] sm:$0xff]
      %v260 = vld [vmem:[%s216 + $0xd8] sm:$0xff]
      %v261 = vld [vmem:[%s216 + $0xe0] sm:$0xff]
      %v262 = vld [vmem:[%s216 + $0xe8] sm:$0xff]
      %v263 = vld [vmem:[%s216 + $0xf0] sm:$0xff]
      %v264 = vld [vmem:[%s216 + $0xf8] sm:$0xff]
      %v265 = vld [vmem:[%s220] sm:$0x1]
      %v267 = vperm.slane %v265, 0
      %v269 = vmul.f32 %v233, %v267
      %v270 = vmul.f32 %v234, %v267
      %v271 = vmul.f32 %v235, %v267
      %v272 = vmul.f32 %v236, %v267
      %v273 = vmul.f32 %v237, %v267
      %v274 = vmul.f32 %v238, %v267
      %v275 = vmul.f32 %v239, %v267
      %v276 = vmul.f32 %v240, %v267
      %v277 = vmul.f32 %v241, %v267
      %v278 = vmul.f32 %v242, %v267
      %v279 = vmul.f32 %v243, %v267
      %v280 = vmul.f32 %v244, %v267
      %v281 = vmul.f32 %v245, %v267
      %v282 = vmul.f32 %v246, %v267
      %v283 = vmul.f32 %v247, %v267
      %v284 = vmul.f32 %v248, %v267
      %v285 = vmul.f32 %v249, %v267
      %v286 = vmul.f32 %v250, %v267
      %v287 = vmul.f32 %v251, %v267
      %v288 = vmul.f32 %v252, %v267
      %v289 = vmul.f32 %v253, %v267
      %v290 = vmul.f32 %v254, %v267
      %v291 = vmul.f32 %v255, %v267
      %v292 = vmul.f32 %v256, %v267
      %v293 = vmul.f32 %v257, %v267
      %v294 = vmul.f32 %v258, %v267
      %v295 = vmul.f32 %v259, %v267
      %v296 = vmul.f32 %v260, %v267
      %v297 = vmul.f32 %v261, %v267
      %v298 = vmul.f32 %v262, %v267
      %v299 = vmul.f32 %v263, %v267
      %v300 = vmul.f32 %v264, %v267
      %v301 = vld [vmem:[%s223] sm:$0x1]
      %v303 = vperm.slane %v301, 0
      %v305 = vadd.f32 %v269, %v303
      %v306 = vadd.f32 %v270, %v303
      %v307 = vadd.f32 %v271, %v303
      %v308 = vadd.f32 %v272, %v303
      %v309 = vadd.f32 %v273, %v303
      %v310 = vadd.f32 %v274, %v303
      %v311 = vadd.f32 %v275, %v303
      %v312 = vadd.f32 %v276, %v303
      %v313 = vadd.f32 %v277, %v303
      %v314 = vadd.f32 %v278, %v303
      %v315 = vadd.f32 %v279, %v303
      %v316 = vadd.f32 %v280, %v303
      %v317 = vadd.f32 %v281, %v303
      %v318 = vadd.f32 %v282, %v303
      %v319 = vadd.f32 %v283, %v303
      %v320 = vadd.f32 %v284, %v303
      %v321 = vadd.f32 %v285, %v303
      %v322 = vadd.f32 %v286, %v303
      %v323 = vadd.f32 %v287, %v303
      %v324 = vadd.f32 %v288, %v303
      %v325 = vadd.f32 %v289, %v303
      %v326 = vadd.f32 %v290, %v303
      %v327 = vadd.f32 %v291, %v303
      %v328 = vadd.f32 %v292, %v303
      %v329 = vadd.f32 %v293, %v303
      %v330 = vadd.f32 %v294, %v303
      %v331 = vadd.f32 %v295, %v303
      %v332 = vadd.f32 %v296, %v303
      %v333 = vadd.f32 %v297, %v303
      %v334 = vadd.f32 %v298, %v303
      %v335 = vadd.f32 %v299, %v303
      %v336 = vadd.f32 %v300, %v303
      %v337 = vmax.f32 %v305, 0.0
      %v338 = vmax.f32 %v306, 0.0
      %v339 = vmax.f32 %v307, 0.0
      %v340 = vmax.f32 %v308, 0.0
      %v341 = vmax.f32 %v309, 0.0
      %v342 = vmax.f32 %v310, 0.0
      %v343 = vmax.f32 %v311, 0.0
      %v344 = vmax.f32 %v312, 0.0
      %v345 = vmax.f32 %v313, 0.0
      %v346 = vmax.f32 %v314, 0.0
      %v347 = vmax.f32 %v315, 0.0
      %v348 = vmax.f32 %v316, 0.0
      %v349 = vmax.f32 %v317, 0.0
      %v350 = vmax.f32 %v318, 0.0
      %v351 = vmax.f32 %v319, 0.0
      %v352 = vmax.f32 %v320, 0.0
      %v353 = vmax.f32 %v321, 0.0
      %v354 = vmax.f32 %v322, 0.0
      %v355 = vmax.f32 %v323, 0.0
      %v356 = vmax.f32 %v324, 0.0
      %v357 = vmax.f32 %v325, 0.0
      %v358 = vmax.f32 %v326, 0.0
      %v359 = vmax.f32 %v327, 0.0
      %v360 = vmax.f32 %v328, 0.0
      %v361 = vmax.f32 %v329, 0.0
      %v362 = vmax.f32 %v330, 0.0
      %v363 = vmax.f32 %v331, 0.0
      %v364 = vmax.f32 %v332, 0.0
      %v365 = vmax.f32 %v333, 0.0
      %v366 = vmax.f32 %v334, 0.0
      %v367 = vmax.f32 %v335, 0.0
      %v368 = vmax.f32 %v336, 0.0
      %v369 = vpack.c.bf16 %v337, %v337
      %v370 = vpack.c.bf16 %v338, %v338
      %v371 = vpack.c.bf16 %v339, %v339
      %v372 = vpack.c.bf16 %v340, %v340
      %v373 = vpack.c.bf16 %v341, %v341
      %v374 = vpack.c.bf16 %v342, %v342
      %v375 = vpack.c.bf16 %v343, %v343
      %v376 = vpack.c.bf16 %v344, %v344
      %v377 = vpack.c.bf16 %v345, %v345
      %v378 = vpack.c.bf16 %v346, %v346
      %v379 = vpack.c.bf16 %v347, %v347
      %v380 = vpack.c.bf16 %v348, %v348
      %v381 = vpack.c.bf16 %v349, %v349
      %v382 = vpack.c.bf16 %v350, %v350
      %v383 = vpack.c.bf16 %v351, %v351
      %v384 = vpack.c.bf16 %v352, %v352
      %v385 = vpack.c.bf16 %v353, %v353
      %v386 = vpack.c.bf16 %v354, %v354
      %v387 = vpack.c.bf16 %v355, %v355
      %v388 = vpack.c.bf16 %v356, %v356
      %v389 = vpack.c.bf16 %v357, %v357
      %v390 = vpack.c.bf16 %v358, %v358
      %v391 = vpack.c.bf16 %v359, %v359
      %v392 = vpack.c.bf16 %v360, %v360
      %v393 = vpack.c.bf16 %v361, %v361
      %v394 = vpack.c.bf16 %v362, %v362
      %v395 = vpack.c.bf16 %v363, %v363
      %v396 = vpack.c.bf16 %v364, %v364
      %v397 = vpack.c.bf16 %v365, %v365
      %v398 = vpack.c.bf16 %v366, %v366
      %v399 = vpack.c.bf16 %v367, %v367
      %v400 = vpack.c.bf16 %v368, %v368
      %401 = vst [vmem:[%s231] sm:$0xf] %v369
      %402 = vst [vmem:[%s231 + $0x4] sm:$0xf] %v370
      %403 = vst [vmem:[%s231 + $0x8] sm:$0xf] %v371
      %404 = vst [vmem:[%s231 + $0xc] sm:$0xf] %v372
      %405 = vst [vmem:[%s231 + $0x10] sm:$0xf] %v373
      %406 = vst [vmem:[%s231 + $0x14] sm:$0xf] %v374
      %407 = vst [vmem:[%s231 + $0x18] sm:$0xf] %v375
      %408 = vst [vmem:[%s231 + $0x1c] sm:$0xf] %v376
      %409 = vst [vmem:[%s231 + $0x20] sm:$0xf] %v377
      %410 = vst [vmem:[%s231 + $0x24] sm:$0xf] %v378
      %411 = vst [vmem:[%s231 + $0x28] sm:$0xf] %v379
      %412 = vst [vmem:[%s231 + $0x2c] sm:$0xf] %v380
      %413 = vst [vmem:[%s231 + $0x30] sm:$0xf] %v381
      %414 = vst [vmem:[%s231 + $0x34] sm:$0xf] %v382
      %415 = vst [vmem:[%s231 + $0x38] sm:$0xf] %v383
      %416 = vst [vmem:[%s231 + $0x3c] sm:$0xf] %v384
      %417 = vst [vmem:[%s231 + $0x40] sm:$0xf] %v385
      %418 = vst [vmem:[%s231 + $0x44] sm:$0xf] %v386
      %419 = vst [vmem:[%s231 + $0x48] sm:$0xf] %v387
      %420 = vst [vmem:[%s231 + $0x4c] sm:$0xf] %v388
      %421 = vst [vmem:[%s231 + $0x50] sm:$0xf] %v389
      %422 = vst [vmem:[%s231 + $0x54] sm:$0xf] %v390
      %423 = vst [vmem:[%s231 + $0x58] sm:$0xf] %v391
      %424 = vst [vmem:[%s231 + $0x5c] sm:$0xf] %v392
      %425 = vst [vmem:[%s231 + $0x60] sm:$0xf] %v393
      %426 = vst [vmem:[%s231 + $0x64] sm:$0xf] %v394
      %427 = vst [vmem:[%s231 + $0x68] sm:$0xf] %v395
      %428 = vst [vmem:[%s231 + $0x6c] sm:$0xf] %v396
      %429 = vst [vmem:[%s231 + $0x70] sm:$0xf] %v397
      %430 = vst [vmem:[%s231 + $0x74] sm:$0xf] %v398
      %431 = vst [vmem:[%s231 + $0x78] sm:$0xf] %v399
      %432 = vst [vmem:[%s231 + $0x7c] sm:$0xf] %v400
      %s433 = smul.u32 32, %s18
      %p434 = scmp.lt.s32.totalorder %s433, 63
      %s435 = scalar_select %p434, %s433, 63
      %p436 = scmp.lt.s32.totalorder %s19, 0
      %s437 = scalar_select %p436, %s19, 0
      %s438 = sadd.s32 %s437, %s435
      %s439 = smul.addr %s438, 4
      %s440 = scalar_lea.vmem %s3, %s439
      // Predicated region
      $region33: #{wide_residual_block_forward.6} parent=31 // pred_check
        %p441 = pneg %p126
      $region34: #{wide_residual_block_forward.6} parent=31 // pred_check_branch
        %443 = sbr.rel (%p441) target = $region36
      $region35: #{wide_residual_block_forward.6} parent=31 // pred_region
        %s444 = smul.u32 32, %s18
      $region36: #{wide_residual_block_forward.6} parent=31 // pred_fallthru
        _
    $region32: #{wide_residual_block_forward.6} parent=5 // pred_fallthru
      _
    %p445 = scmp.le.s32.totalorder 2, %s9
    // Predicated region
    $region37: #{wide_residual_block_forward.6} parent=5 // pred_check
      %p446 = pneg %p445
    $region38: #{wide_residual_block_forward.6} parent=5 // pred_check_branch
      %448 = sbr.rel (%p446) target = $region40
    $region39: #{wide_residual_block_forward.6} parent=5 // pred_region
      %s449 = ssub.s32 %s9, 2
      // Predicated region
      $region41: #{wide_residual_block_forward.6} parent=39 // pred_check
        %p450 = pneg %p132
      $region42: #{wide_residual_block_forward.6} parent=39 // pred_check_branch
        %452 = sbr.rel (%p450) target = $region44
      $region43: #{wide_residual_block_forward.6} parent=39 // pred_region
        %s453 = smul.u32 32, %s20
        %p454 = scmp.lt.s32.totalorder %s453, 63
        %s455 = scalar_select %p454, %s453, 63
        %p456 = scmp.lt.s32.totalorder %s21, 0
        %s457 = scalar_select %p456, %s21, 0
        %s458 = sadd.s32 %s457, %s455
        %s459 = smul.addr %s458, 4
        %s460 = scalar_lea.vmem %s3, %s459
      $region44: #{wide_residual_block_forward.6} parent=39 // pred_fallthru
        _
    $region40: #{wide_residual_block_forward.6} parent=5 // pred_fallthru
      _
  $region6: #{wide_residual_block_forward.6} parent=0 // loop_footer
    %s13 = sadd.s32 1, %s9
  $region7: #{wide_residual_block_forward.6} parent=0 // loop_footer_branch
    %8 = sbr.rel target = $region3
  $region8: #{wide_residual_block_forward.6} parent=0 // loop_exit
    _

// kernel: wide_residual_block_forward.7
$region0: #{wide_residual_block_forward.7}
  #allocation0 [shape = 'u32[]', space=smem, size = 0x4, offset = 0x4, fixed_abs, tag = 'smem constant byte address 0x4 - core index']
  #allocation1 [shape = 'u32[72,128]{1,0:T(1,128)}', space=vmem, size = 0x9000, scoped, tag = 'internal scratch']
  #allocation2 [shape = 'f32[64,128]{1,0:T(8,128)}', space=vmem, size = 0x8000, scoped, tag = 'scratch operand']
  %s0 = inlined_call_operand.vmem [shape: bf16[128,128], index: 0, kind: input, shape index: {}]
  %s1 = inlined_call_operand.vmem [shape: bf16[128,128], index: 1, kind: input, shape index: {}]
  %s2 = inlined_call_operand.vmem [shape: f32[1,128], index: 2, kind: input, shape index: {}]
  %s3 = inlined_call_operand.vmem [shape: bf16[128,128], index: 3, kind: output, shape index: {0}]
  %s4 = inlined_call_operand.vmem [shape: f32[2,1,128], index: 4, kind: output, shape index: {1}]
  %s5 = inlined_call_operand.vmem [shape: f32[2,1,128], index: 5, kind: output, shape index: {2}]
  %6 = xla_tuple %s3, %s4, %s5
  %s7 = sld [smem:[#allocation0]]
  $region69: #{wide_residual_block_forward.7} parent=0
    _
  %s9 = ssub.s32 1, %s7
  %s10 = scalar_select 0, %s9, %s7
  loop: start=0, step=1, limit=4
  $region2: #{wide_residual_block_forward.7} parent=0 // loop_pre_header
    _
  $region3: #{wide_residual_block_forward.7} parent=0 // loop_header
    %s12 = sphi 0, %s16
    %p13 = scmp.ge.s32.totalorder %s12, 4
    %s19 = sphi 0, %s38
    %s20 = sphi 0, %s34
    %s21 = sphi 0, %s30
    %s22 = sphi 0, %s19
    %s23 = sphi 0, %s20
    %s24 = sphi 0, %s21
    %s25 = sphi 0, %s22
    %s26 = sphi 0, %s23
    %s27 = sphi 0, %s24
    %s43 = sphi 0, %s45
    %s46 = sphi 0, %s43
    %s47 = sphi 0, %s46
    %s63 = sphi 0, %s47
    %s71 = sphi 0, %s73
    %s74 = sphi 0, %s71
    %s75 = sphi 0, %s74
    %s91 = sphi 0, %s75
    %s97 = sphi 0, %s99
    %s100 = sphi 0, %s97
    %s101 = sphi 0, %s100
    %s117 = sphi 0, %s101
    %s125 = sphi 0, %s127
    %s128 = sphi 0, %s125
    %s129 = sphi 0, %s128
    %s145 = sphi 0, %s129
    %s153 = sphi 0, %s155
    %s156 = sphi 0, %s153
    %s157 = sphi 0, %s156
    %s173 = sphi 0, %s157
    %s181 = sphi 0, %s183
    %s184 = sphi 0, %s181
    %s185 = sphi 0, %s184
    %s201 = sphi 0, %s185
  $region4: #{wide_residual_block_forward.7} parent=0 // loop_header_branch
    %15 = sbr.rel (%p13) target = $region8
  $region5: #{wide_residual_block_forward.7} parent=0 // loop_body
    %s17 = ssub.s32 %s12, 1
    %s18 = ssub.s32 %s12, 2
    %s28 = sadd.s32 1, %s21
    %p29 = scmp.ge.s32.totalorder %s28, 1
    %s30 = scalar_select %p29, 0, %s28
    %s31 = sadd.s32 1, %s20
    %s32 = scalar_select %p29, %s31, %s20
    %p33 = scmp.ge.s32.totalorder %s32, 2
    %s34 = scalar_select %p33, 0, %s32
    %s35 = sadd.s32 1, %s19
    %s36 = scalar_select %p33, %s35, %s19
    %p37 = scmp.ge.s32.totalorder %s36, 1
    %s38 = scalar_select %p37, 0, %s36
    %s39 = ssub.s32 %s20, %s34
    %s40 = ssub.s32 %s21, %s30
    %s41 = sor.u32 %s39, %s40
    %p42 = scmp.eq.s32.totalorder %s41, 0
    %s44 = sadd.s32 %s43, 1
    %s45 = scalar_select %p42, %s43, %s44
    %p48 = pneg %p42
    %p49 = scmp.eq.s32.totalorder %s12, 1
    %p50 = por %p48, %p49
    %p51 = scmp.ne.s32.totalorder %s43, %s46
    %p52 = scmp.eq.s32.totalorder %s12, 0
    %p53 = por %p51, %p52
    %p54 = scmp.ne.s32.totalorder %s43, %s46
    %p55 = scmp.eq.s32.totalorder %s17, 1
    %p56 = por %p54, %p55
    %p57 = scmp.ne.s32.totalorder %s46, %s47
    %p58 = scmp.eq.s32.totalorder %s17, 0
    %p59 = por %p57, %p58
    %p60 = scmp.ne.s32.totalorder %s46, %s47
    %p61 = scmp.eq.s32.totalorder %s18, 1
    %p62 = por %p60, %p61
    %p64 = scmp.ne.s32.totalorder %s47, %s63
    %p65 = scmp.eq.s32.totalorder %s18, 0
    %p66 = por %p64, %p65
    %s67 = ssub.s32 %s21, %s30
    %s68 = ssub.s32 %s19, %s38
    %s69 = sor.u32 %s67, %s68
    %p70 = scmp.eq.s32.totalorder %s69, 0
    %s72 = sadd.s32 %s71, 1
    %s73 = scalar_select %p70, %s71, %s72
    %p76 = pneg %p70
    %p77 = scmp.eq.s32.totalorder %s12, 1
    %p78 = por %p76, %p77
    %p79 = scmp.ne.s32.totalorder %s71, %s74
    %p80 = scmp.eq.s32.totalorder %s12, 0
    %p81 = por %p79, %p80
    %p82 = scmp.ne.s32.totalorder %s71, %s74
    %p83 = scmp.eq.s32.totalorder %s17, 1
    %p84 = por %p82, %p83
    %p85 = scmp.ne.s32.totalorder %s74, %s75
    %p86 = scmp.eq.s32.totalorder %s17, 0
    %p87 = por %p85, %p86
    %p88 = scmp.ne.s32.totalorder %s74, %s75
    %p89 = scmp.eq.s32.totalorder %s18, 1
    %p90 = por %p88, %p89
    %p92 = scmp.ne.s32.totalorder %s75, %s91
    %p93 = scmp.eq.s32.totalorder %s18, 0
    %p94 = por %p92, %p93
    %s95 = ssub.s32 %s19, %s38
    %p96 = scmp.eq.s32.totalorder %s95, 0
    %s98 = sadd.s32 %s97, 1
    %s99 = scalar_select %p96, %s97, %s98
    %p102 = pneg %p96
    %p103 = scmp.eq.s32.totalorder %s12, 1
    %p104 = por %p102, %p103
    %p105 = scmp.ne.s32.totalorder %s97, %s100
    %p106 = scmp.eq.s32.totalorder %s12, 0
    %p107 = por %p105, %p106
    %p108 = scmp.ne.s32.totalorder %s97, %s100
    %p109 = scmp.eq.s32.totalorder %s17, 1
    %p110 = por %p108, %p109
    %p111 = scmp.ne.s32.totalorder %s100, %s101
    %p112 = scmp.eq.s32.totalorder %s17, 0
    %p113 = por %p111, %p112
    %p114 = scmp.ne.s32.totalorder %s100, %s101
    %p115 = scmp.eq.s32.totalorder %s18, 1
    %p116 = por %p114, %p115
    %p118 = scmp.ne.s32.totalorder %s101, %s117
    %p119 = scmp.eq.s32.totalorder %s18, 0
    %p120 = por %p118, %p119
    %s121 = ssub.s32 %s20, %s34
    %s122 = ssub.s32 %s19, %s38
    %s123 = sor.u32 %s121, %s122
    %p124 = scmp.eq.s32.totalorder %s123, 0
    %s126 = sadd.s32 %s125, 1
    %s127 = scalar_select %p124, %s125, %s126
    %p130 = pneg %p124
    %p131 = scmp.eq.s32.totalorder %s12, 1
    %p132 = por %p130, %p131
    %p133 = scmp.ne.s32.totalorder %s125, %s128
    %p134 = scmp.eq.s32.totalorder %s12, 0
    %p135 = por %p133, %p134
    %p136 = scmp.ne.s32.totalorder %s125, %s128
    %p137 = scmp.eq.s32.totalorder %s17, 1
    %p138 = por %p136, %p137
    %p139 = scmp.ne.s32.totalorder %s128, %s129
    %p140 = scmp.eq.s32.totalorder %s17, 0
    %p141 = por %p139, %p140
    %p142 = scmp.ne.s32.totalorder %s128, %s129
    %p143 = scmp.eq.s32.totalorder %s18, 1
    %p144 = por %p142, %p143
    %p146 = scmp.ne.s32.totalorder %s129, %s145
    %p147 = scmp.eq.s32.totalorder %s18, 0
    %p148 = por %p146, %p147
    %s149 = ssub.s32 %s20, %s34
    %s150 = ssub.s32 %s19, %s38
    %s151 = sor.u32 %s149, %s150
    %p152 = scmp.eq.s32.totalorder %s151, 0
    %s154 = sadd.s32 %s153, 1
    %s155 = scalar_select %p152, %s153, %s154
    %p158 = pneg %p152
    %p159 = scmp.eq.s32.totalorder %s12, 1
    %p160 = por %p158, %p159
    %p161 = scmp.ne.s32.totalorder %s153, %s156
    %p162 = scmp.eq.s32.totalorder %s12, 0
    %p163 = por %p161, %p162
    %p164 = scmp.ne.s32.totalorder %s153, %s156
    %p165 = scmp.eq.s32.totalorder %s17, 1
    %p166 = por %p164, %p165
    %p167 = scmp.ne.s32.totalorder %s156, %s157
    %p168 = scmp.eq.s32.totalorder %s17, 0
    %p169 = por %p167, %p168
    %p170 = scmp.ne.s32.totalorder %s156, %s157
    %p171 = scmp.eq.s32.totalorder %s18, 1
    %p172 = por %p170, %p171
    %p174 = scmp.ne.s32.totalorder %s157, %s173
    %p175 = scmp.eq.s32.totalorder %s18, 0
    %p176 = por %p174, %p175
    %s177 = ssub.s32 %s20, %s34
    %s178 = ssub.s32 %s19, %s38
    %s179 = sor.u32 %s177, %s178
    %p180 = scmp.eq.s32.totalorder %s179, 0
    %s182 = sadd.s32 %s181, 1
    %s183 = scalar_select %p180, %s181, %s182
    %p186 = pneg %p180
    %p187 = scmp.eq.s32.totalorder %s12, 1
    %p188 = por %p186, %p187
    %p189 = scmp.ne.s32.totalorder %s181, %s184
    %p190 = scmp.eq.s32.totalorder %s12, 0
    %p191 = por %p189, %p190
    %p192 = scmp.ne.s32.totalorder %s181, %s184
    %p193 = scmp.eq.s32.totalorder %s17, 1
    %p194 = por %p192, %p193
    %p195 = scmp.ne.s32.totalorder %s184, %s185
    %p196 = scmp.eq.s32.totalorder %s17, 0
    %p197 = por %p195, %p196
    %p198 = scmp.ne.s32.totalorder %s184, %s185
    %p199 = scmp.eq.s32.totalorder %s18, 1
    %p200 = por %p198, %p199
    %p202 = scmp.ne.s32.totalorder %s185, %s201
    %p203 = scmp.eq.s32.totalorder %s18, 0
    %p204 = por %p202, %p203
    %p205 = scmp.le.s32.totalorder 1, %s12
    %p206 = scmp.lt.s32.totalorder %s12, 3
    %p207 = pnand %p205, %p206
    %p208 = pneg %p207
    // Predicated region
    $region9: #{wide_residual_block_forward.7} parent=5 // pred_check
      _
    $region10: #{wide_residual_block_forward.7} parent=5 // pred_check_branch
      %210 = sbr.rel (%p207) target = $region12
    $region11: #{wide_residual_block_forward.7} parent=5 // pred_region
      %s211 = ssub.s32 %s12, 1
      // Predicated region
      $region13: #{wide_residual_block_forward.7} parent=11 // pred_check
        %p212 = pneg %p87
      $region14: #{wide_residual_block_forward.7} parent=11 // pred_check_branch
        %214 = sbr.rel (%p212) target = $region16
      $region15: #{wide_residual_block_forward.7} parent=11 // pred_region
        %s215 = smul.u32 16, %s24
        %p216 = scmp.lt.s32.totalorder %s215, 15
        %s217 = scalar_select %p216, %s215, 15
        %p218 = scmp.lt.s32.totalorder %s22, 0
        %s219 = scalar_select %p218, %s22, 0
        %s220 = sadd.s32 %s219, %s217
        %s221 = smul.addr %s220, 4
        %s222 = scalar_lea.vmem %s1, %s221
        %s223 = smul.u32 16, %s24
      $region16: #{wide_residual_block_forward.7} parent=11 // pred_fallthru
        _
      // Predicated region
      $region17: #{wide_residual_block_forward.7} parent=11 // pred_check
        %p224 = pneg %p113
      $region18: #{wide_residual_block_forward.7} parent=11 // pred_check_branch
        %226 = sbr.rel (%p224) target = $region20
      $region19: #{wide_residual_block_forward.7} parent=11 // pred_region
        %p227 = scmp.lt.s32.totalorder %s22, 0
        %s228 = scalar_select %p227, %s22, 0
        %s229 = scalar_lea.vmem %s2, %s228
      $region20: #{wide_residual_block_forward.7} parent=11 // pred_fallthru
        _
    $region12: #{wide_residual_block_forward.7} parent=5 // pred_fallthru
      _
    %p230 = scmp.lt.s32.totalorder %s12, 2
    // Predicated region
    $region21: #{wide_residual_block_forward.7} parent=5 // pred_check
      %p231 = pneg %p230
    $region22: #{wide_residual_block_forward.7} parent=5 // pred_check_branch
      %233 = sbr.rel (%p231) target = $region24
    $region23: #{wide_residual_block_forward.7} parent=5 // pred_region
      // Predicated region
      $region25: #{wide_residual_block_forward.7} parent=23 // pred_check
        %p234 = pneg %p53
      $region26: #{wide_residual_block_forward.7} parent=23 // pred_check_branch
        %236 = sbr.rel (%p234) target = $region28
      $region27: #{wide_residual_block_forward.7} parent=23 // pred_region
        %s237 = smul.u32 8, %s20
        %p238 = scmp.lt.s32.totalorder %s237, 15
        %s239 = scalar_select %p238, %s237, 15
        %p240 = scmp.lt.s32.totalorder %s21, 0
        %s241 = scalar_select %p240, %s21, 0
        %s242 = sadd.s32 %s241, %s239
        %s243 = smul.addr %s242, 4
        %s244 = scalar_lea.vmem %s0, %s243
        %s245 = smul.u32 8, %s20
      $region28: #{wide_residual_block_forward.7} parent=23 // pred_fallthru
        _
    $region24: #{wide_residual_block_forward.7} parent=5 // pred_fallthru
      _
    %p246 = scmp.le.s32.totalorder 1, %s12
    %p247 = scmp.lt.s32.totalorder %s12, 3
    %p248 = pnand %p246, %p247
    %p249 = pneg %p248
    // Predicated region
    $region29: #{wide_residual_block_forward.7} parent=5 // pred_check
      _
    $region30: #{wide_residual_block_forward.7} parent=5 // pred_check_branch
      %251 = sbr.rel (%p248) target = $region32
    $region31: #{wide_residual_block_forward.7} parent=5 // pred_region
      %s252 = ssub.s32 %s12, 1
      %s253 = smul.u32 8, %s23
      %p254 = scmp.lt.s32.totalorder %s253, 15
      %s255 = scalar_select %p254, %s253, 15
      %p256 = scmp.lt.s32.totalorder %s24, 0
      %s257 = scalar_select %p256, %s24, 0
      %s258 = sadd.s32 %s257, %s255
      %s259 = smul.addr %s258, 4
      %s260 = scalar_lea.vmem %s0, %s259
      %p261 = pneg %p59
      %p262 = pneg %p56
      %s263 = smul.u32 16, %s24
      %p264 = scmp.lt.s32.totalorder %s263, 15
      %s265 = scalar_select %p264, %s263, 15
      %p266 = scmp.lt.s32.totalorder %s22, 0
      %s267 = scalar_select %p266, %s22, 0
      %s268 = sadd.s32 %s267, %s265
      %s269 = smul.addr %s268, 4
      %s270 = scalar_lea.vmem %s1, %s269
      %p271 = pneg %p87
      %p272 = pneg %p84
      %p273 = scmp.lt.s32.totalorder %s22, 0
      %s274 = scalar_select %p273, %s22, 0
      %s275 = scalar_lea.vmem %s2, %s274
      %p276 = pneg %p113
      %p277 = pneg %p110
      %p278 = pneg %p141
      %p279 = pneg %p138
      %s280 = smul.u32 8, %s23
      %p281 = scmp.lt.s32.totalorder %s280, 15
      %s282 = scalar_select %p281, %s280, 15
      %p283 = scmp.lt.s32.totalorder %s22, 0
      %s284 = scalar_select %p283, %s22, 0
      %s285 = sadd.s32 %s284, %s282
      %s286 = smul.addr %s285, 4
      %s287 = scalar_lea.vmem %s3, %s286
      %p288 = pneg %p169
      %p289 = pneg %p166
      %p290 = scmp.lt.s32.totalorder %s23, 1
      %s291 = scalar_select %p290, %s23, 1
      %p292 = scmp.lt.s32.totalorder %s22, 0
      %s293 = scalar_select %p292, %s22, 0
      %s294 = sadd.s32 %s293, %s291
      %s295 = scalar_lea.vmem %s4, %s294
      %p296 = pneg %p197
      %p297 = pneg %p194
      %p298 = scmp.lt.s32.totalorder %s23, 1
      %s299 = scalar_select %p298, %s23, 1
      %p300 = scmp.lt.s32.totalorder %s22, 0
      %s301 = scalar_select %p300, %s22, 0
      %s302 = sadd.s32 %s301, %s299
      %s303 = scalar_lea.vmem %s5, %s302
      %s304 = smul.u32 8, %s23
      %p305 = scmp.lt.s32.totalorder %s304, 15
      %s306 = scalar_select %p305, %s304, 15
      %p307 = scmp.lt.s32.totalorder %s24, 0
      %s308 = scalar_select %p307, %s24, 0
      %s309 = sadd.s32 %s308, %s306
      %s310 = smul.addr %s309, 4
      %s311 = scalar_lea.vmem %s0, %s310
      %s312 = smul.u32 8, %s23
      %s313 = smul.u32 16, %s24
      %p314 = scmp.lt.s32.totalorder %s313, 15
      %s315 = scalar_select %p314, %s313, 15
      %p316 = scmp.lt.s32.totalorder %s22, 0
      %s317 = scalar_select %p316, %s22, 0
      %s318 = sadd.s32 %s317, %s315
      %s319 = smul.addr %s318, 4
      %s320 = scalar_lea.vmem %s1, %s319
      %s321 = smul.u32 16, %s24
      %p322 = scmp.lt.s32.totalorder %s22, 0
      %s323 = scalar_select %p322, %s22, 0
      %s324 = scalar_lea.vmem %s2, %s323
      %s325 = smul.u32 8, %s23
      %p326 = scmp.lt.s32.totalorder %s325, 15
      %s327 = scalar_select %p326, %s325, 15
      %p328 = scmp.lt.s32.totalorder %s22, 0
      %s329 = scalar_select %p328, %s22, 0
      %s330 = sadd.s32 %s329, %s327
      %s331 = smul.addr %s330, 4
      %s332 = scalar_lea.vmem %s3, %s331
      %s333 = smul.u32 8, %s23
      %p334 = scmp.lt.s32.totalorder %s23, 1
      %s335 = scalar_select %p334, %s23, 1
      %p336 = scmp.lt.s32.totalorder %s22, 0
      %s337 = scalar_select %p336, %s22, 0
      %s338 = sadd.s32 %s337, %s335
      %s339 = scalar_lea.vmem %s4, %s338
      %p340 = scmp.lt.s32.totalorder %s23, 1
      %s341 = scalar_select %p340, %s23, 1
      %p342 = scmp.lt.s32.totalorder %s22, 0
      %s343 = scalar_select %p342, %s22, 0
      %s344 = sadd.s32 %s343, %s341
      %s345 = scalar_lea.vmem %s5, %s344
      %p346 = scmp.eq.s32.totalorder %s24, 0
      // Predicated region
      $region33: #{wide_residual_block_forward.7} parent=31 // pred_check
        %p347 = pneg %p346
      $region34: #{wide_residual_block_forward.7} parent=31 // pred_check_branch
        %349 = sbr.rel (%p347) target = $region36
      $region35: #{wide_residual_block_forward.7} parent=31 // pred_region
        %350 = vst [vmem:[#allocation2] sm:$0xff] 0.0
        %351 = vst [vmem:[#allocation2 + $0x8] sm:$0xff] 0.0
        %352 = vst [vmem:[#allocation2 + $0x10] sm:$0xff] 0.0
        %353 = vst [vmem:[#allocation2 + $0x18] sm:$0xff] 0.0
        %354 = vst [vmem:[#allocation2 + $0x20] sm:$0xff] 0.0
        %355 = vst [vmem:[#allocation2 + $0x28] sm:$0xff] 0.0
        %356 = vst [vmem:[#allocation2 + $0x30] sm:$0xff] 0.0
        %357 = vst [vmem:[#allocation2 + $0x38] sm:$0xff] 0.0
      $region36: #{wide_residual_block_forward.7} parent=31 // pred_fallthru
        _
      %v358 = vld [vmem:[#allocation2] sm:$0xff]
      %v359 = vld [vmem:[#allocation2 + $0x8] sm:$0xff]
      %v360 = vld [vmem:[#allocation2 + $0x10] sm:$0xff]
      %v361 = vld [vmem:[#allocation2 + $0x18] sm:$0xff]
      %v362 = vld [vmem:[#allocation2 + $0x20] sm:$0xff]
      %v363 = vld [vmem:[#allocation2 + $0x28] sm:$0xff]
      %v364 = vld [vmem:[#allocation2 + $0x30] sm:$0xff]
      %v365 = vld [vmem:[#allocation2 + $0x38] sm:$0xff]
      %v366 = vld [vmem:[%s311] sm:$0xf]
      %v367 = vld [vmem:[%s311 + $0x4] sm:$0xf]
      %v368 = vld [vmem:[%s311 + $0x8] sm:$0xf]
      %v369 = vld [vmem:[%s311 + $0xc] sm:$0xf]
      %v370 = vld [vmem:[%s311 + $0x10] sm:$0xf]
      %v371 = vld [vmem:[%s311 + $0x14] sm:$0xf]
      %v372 = vld [vmem:[%s311 + $0x18] sm:$0xf]
      %v373 = vld [vmem:[%s311 + $0x1c] sm:$0xf]
      %v374 = vld [vmem:[%s320] sm:$0xf]
      %v375 = vld [vmem:[%s320 + $0x4] sm:$0xf]
      %v376 = vld [vmem:[%s320 + $0x8] sm:$0xf]
      %v377 = vld [vmem:[%s320 + $0xc] sm:$0xf]
      %v378 = vld [vmem:[%s320 + $0x10] sm:$0xf]
      %v379 = vld [vmem:[%s320 + $0x14] sm:$0xf]
      %v380 = vld [vmem:[%s320 + $0x18] sm:$0xf]
      %v381 = vld [vmem:[%s320 + $0x1c] sm:$0xf]
      %v382 = vld [vmem:[%s320 + $0x20] sm:$0xf]
      %v383 = vld [vmem:[%s320 + $0x24] sm:$0xf]
      %v384 = vld [vmem:[%s320 + $0x28] sm:$0xf]
      %v385 = vld [vmem:[%s320 + $0x2c] sm:$0xf]
      %v386 = vld [vmem:[%s320 + $0x30] sm:$0xf]
      %v387 = vld [vmem:[%s320 + $0x34] sm:$0xf]
      %v388 = vld [vmem:[%s320 + $0x38] sm:$0xf]
      %v389 = vld [vmem:[%s320 + $0x3c] sm:$0xf]
      %v398 = vunpack.c.l.b16 %v366
      %v399 = vunpack.c.l.b16 %v367
      %v400 = vunpack.c.l.b16 %v368
      %v401 = vunpack.c.l.b16 %v369
      %v402 = vunpack.c.l.b16 %v370
      %v403 = vunpack.c.l.b16 %v371
      %v404 = vunpack.c.l.b16 %v372
      %v405 = vunpack.c.l.b16 %v373
      %v406 = vpack.c.b16 %v399, %v398
      %v407 = vpack.c.b16 %v401, %v400
      %v408 = vpack.c.b16 %v403, %v402
      %v409 = vpack.c.b16 %v405, %v404
      %v430 = vunpack.c.l.b16 %v374
      %v431 = vunpack.c.l.b16 %v375
      %v432 = vunpack.c.l.b16 %v376
      %v433 = vunpack.c.l.b16 %v377
      %v434 = vunpack.c.l.b16 %v378
      %v435 = vunpack.c.l.b16 %v379
      %v436 = vunpack.c.l.b16 %v380
      %v437 = vunpack.c.l.b16 %v381
      %v438 = vunpack.c.l.b16 %v382
      %v439 = vunpack.c.l.b16 %v383
      %v440 = vunpack.c.l.b16 %v384
      %v441 = vunpack.c.l.b16 %v385
      %v442 = vunpack.c.l.b16 %v386
      %v443 = vunpack.c.l.b16 %v387
      %v444 = vunpack.c.l.b16 %v388
      %v445 = vunpack.c.l.b16 %v389
      %v446 = vpack.c.b16 %v431, %v430
      %v447 = vpack.c.b16 %v433, %v432
      %v448 = vpack.c.b16 %v435, %v434
      %v449 = vpack.c.b16 %v437, %v436
      %v450 = vpack.c.b16 %v439, %v438
      %v451 = vpack.c.b16 %v441, %v440
      %v452 = vpack.c.b16 %v443, %v442
      %v453 = vpack.c.b16 %v445, %v444
      %462 = vmatpush.bf16.msra.mxu0 %v453
      %463 = vmatpush.bf16.msra.mxu0 %v452
      %464 = vmatpush.bf16.msra.mxu0 %v451
      %465 = vmatpush.bf16.msra.mxu0 %v450
      %466 = vmatpush.bf16.msra.mxu0 %v449
      %467 = vmatpush.bf16.msra.mxu0 %v448
      %468 = vmatpush.bf16.msra.mxu0 %v447
      %469 = vmatpush.bf16.msra.mxu0 %v446
      %470 = vmatmul.bf16.gmra.mxu0 %v406
      %v471 = vpop.f32.mrf.mxu0
      %v472 = vadd.f32 0.0, %v471
      %v473 = vpop.f32.mrf.mxu0
      %v474 = vadd.f32 0.0, %v473
      %475 = vmatmul.bf16.gmra.mxu0 %v407
      %v476 = vpop.f32.mrf.mxu0
      %v477 = vadd.f32 0.0, %v476
      %v478 = vpop.f32.mrf.mxu0
      %v479 = vadd.f32 0.0, %v478
      %480 = vmatmul.bf16.gmra.mxu0 %v408
      %v481 = vpop.f32.mrf.mxu0
      %v482 = vadd.f32 0.0, %v481
      %v483 = vpop.f32.mrf.mxu0
      %v484 = vadd.f32 0.0, %v483
      %485 = vmatmul.bf16.gmra.mxu0 %v409
      %v486 = vpop.f32.mrf.mxu0
      %v487 = vadd.f32 0.0, %v486
      %v488 = vpop.f32.mrf.mxu0
      %v489 = vadd.f32 0.0, %v488
      %490 = vdwg.mxu0
      %v491 = vadd.f32 %v358, %v472
      %v492 = vadd.f32 %v359, %v474
      %v493 = vadd.f32 %v360, %v477
      %v494 = vadd.f32 %v361, %v479
      %v495 = vadd.f32 %v362, %v482
      %v496 = vadd.f32 %v363, %v484
      %v497 = vadd.f32 %v364, %v487
      %v498 = vadd.f32 %v365, %v489
      %499 = vst [vmem:[#allocation2] sm:$0xff] %v491
      %500 = vst [vmem:[#allocation2 + $0x8] sm:$0xff] %v492
      %501 = vst [vmem:[#allocation2 + $0x10] sm:$0xff] %v493
      %502 = vst [vmem:[#allocation2 + $0x18] sm:$0xff] %v494
      %503 = vst [vmem:[#allocation2 + $0x20] sm:$0xff] %v495
      %504 = vst [vmem:[#allocation2 + $0x28] sm:$0xff] %v496
      %505 = vst [vmem:[#allocation2 + $0x30] sm:$0xff] %v497
      %506 = vst [vmem:[#allocation2 + $0x38] sm:$0xff] %v498
      // Predicated region
      $region37: #{wide_residual_block_forward.7} parent=31 // pred_check
        %p507 = pneg %p346
      $region38: #{wide_residual_block_forward.7} parent=31 // pred_check_branch
        %509 = sbr.rel (%p507) target = $region40
      $region39: #{wide_residual_block_forward.7} parent=31 // pred_region
        %v510 = vld [vmem:[#allocation2] sm:$0xff]
        %v511 = vld [vmem:[#allocation2 + $0x8] sm:$0xff]
        %v512 = vld [vmem:[#allocation2 + $0x10] sm:$0xff]
        %v513 = vld [vmem:[#allocation2 + $0x18] sm:$0xff]
        %v514 = vld [vmem:[#allocation2 + $0x20] sm:$0xff]
        %v515 = vld [vmem:[#allocation2 + $0x28] sm:$0xff]
        %v516 = vld [vmem:[#allocation2 + $0x30] sm:$0xff]
        %v517 = vld [vmem:[#allocation2 + $0x38] sm:$0xff]
        %v518 = vld [vmem:[%s324] sm:$0x1]
        %v520 = vperm.slane %v518, 0
        %v522 = vadd.f32 %v510, %v520
        %v523 = vadd.f32 %v511, %v520
        %v524 = vadd.f32 %v512, %v520
        %v525 = vadd.f32 %v513, %v520
        %v526 = vadd.f32 %v514, %v520
        %v527 = vadd.f32 %v515, %v520
        %v528 = vadd.f32 %v516, %v520
        %v529 = vadd.f32 %v517, %v520
        %v530 = vpack.c.bf16 %v522, %v522
        %v531 = vpack.c.bf16 %v523, %v523
        %v532 = vpack.c.bf16 %v524, %v524
        %v533 = vpack.c.bf16 %v525, %v525
        %v534 = vpack.c.bf16 %v526, %v526
        %v535 = vpack.c.bf16 %v527, %v527
        %v536 = vpack.c.bf16 %v528, %v528
        %v537 = vpack.c.bf16 %v529, %v529
        %538 = vst [vmem:[%s332] sm:$0xf] %v530
        %539 = vst [vmem:[%s332 + $0x4] sm:$0xf] %v531
        %540 = vst [vmem:[%s332 + $0x8] sm:$0xf] %v532
        %541 = vst [vmem:[%s332 + $0xc] sm:$0xf] %v533
        %542 = vst [vmem:[%s332 + $0x10] sm:$0xf] %v534
        %543 = vst [vmem:[%s332 + $0x14] sm:$0xf] %v535
        %544 = vst [vmem:[%s332 + $0x18] sm:$0xf] %v536
        %545 = vst [vmem:[%s332 + $0x1c] sm:$0xf] %v537
        %v546 = vadd.f32 %v510, %v511
        %v547 = vadd.f32 %v546, %v512
        %v548 = vadd.f32 %v547, %v513
        %v549 = vadd.f32 %v548, %v514
        %v550 = vadd.f32 %v549, %v515
        %v551 = vadd.f32 %v550, %v516
        %v552 = vadd.f32 %v551, %v517
        %v553 = vrot.slane %v552, 4
        %v554 = vadd.f32 %v552, %v553
        %v555 = vrot.slane %v554, 2
        %v556 = vadd.f32 %v554, %v555
        %v557 = vrot.slane %v556, 1
        %v558 = vadd.f32 %v556, %v557
        %559 = vst [vmem:[%s339] sm:$0x1] %v558
        %v560 = vmul.f32 %v510, %v510
        %v561 = vmul.f32 %v511, %v511
        %v562 = vmul.f32 %v512, %v512
        %v563 = vmul.f32 %v513, %v513
        %v564 = vmul.f32 %v514, %v514
        %v565 = vmul.f32 %v515, %v515
        %v566 = vmul.f32 %v516, %v516
        %v567 = vmul.f32 %v517, %v517
        %v568 = vadd.f32 %v560, %v561
        %v569 = vadd.f32 %v568, %v562
        %v570 = vadd.f32 %v569, %v563
        %v571 = vadd.f32 %v570, %v564
        %v572 = vadd.f32 %v571, %v565
        %v573 = vadd.f32 %v572, %v566
        %v574 = vadd.f32 %v573, %v567
        %v575 = vrot.slane %v574, 4
        %v576 = vadd.f32 %v574, %v575
        %v577 = vrot.slane %v576, 2
        %v578 = vadd.f32 %v576, %v577
        %v579 = vrot.slane %v578, 1
        %v580 = vadd.f32 %v578, %v579
        %581 = vst [vmem:[%s345] sm:$0x1] %v580
      $region40: #{wide_residual_block_forward.7} parent=31 // pred_fallthru
        _
      %s582 = smul.u32 8, %s23
      %p583 = scmp.lt.s32.totalorder %s582, 15
      %s584 = scalar_select %p583, %s582, 15
      %p585 = scmp.lt.s32.totalorder %s22, 0
      %s586 = scalar_select %p585, %s22, 0
      %s587 = sadd.s32 %s586, %s584
      %s588 = smul.addr %s587, 4
      %s589 = scalar_lea.vmem %s3, %s588
      %p590 = scmp.lt.s32.totalorder %s23, 1
      %s591 = scalar_select %p590, %s23, 1
      %p592 = scmp.lt.s32.totalorder %s22, 0
      %s593 = scalar_select %p592, %s22, 0
      %s594 = sadd.s32 %s593, %s591
      %s595 = scalar_lea.vmem %s4, %s594
      %p596 = scmp.lt.s32.totalorder %s23, 1
      %s597 = scalar_select %p596, %s23, 1
      %p598 = scmp.lt.s32.totalorder %s22, 0
      %s599 = scalar_select %p598, %s22, 0
      %s600 = sadd.s32 %s599, %s597
      %s601 = scalar_lea.vmem %s5, %s600
      // Predicated region
      $region41: #{wide_residual_block_forward.7} parent=31 // pred_check
        %p602 = pneg %p138
      $region42: #{wide_residual_block_forward.7} parent=31 // pred_check_branch
        %604 = sbr.rel (%p602) target = $region44
      $region43: #{wide_residual_block_forward.7} parent=31 // pred_region
        %s605 = smul.u32 8, %s23
      $region44: #{wide_residual_block_forward.7} parent=31 // pred_fallthru
        _
      // Predicated region
      $region45: #{wide_residual_block_forward.7} parent=31 // pred_check
        %p606 = pneg %p166
      $region46: #{wide_residual_block_forward.7} parent=31 // pred_check_branch
        %608 = sbr.rel (%p606) target = $region48
      $region47: #{wide_residual_block_forward.7} parent=31 // pred_region
        _
      $region48: #{wide_residual_block_forward.7} parent=31 // pred_fallthru
        _
      // Predicated region
      $region49: #{wide_residual_block_forward.7} parent=31 // pred_check
        %p609 = pneg %p194
      $region50: #{wide_residual_block_forward.7} parent=31 // pred_check_branch
        %611 = sbr.rel (%p609) target = $region52
      $region51: #{wide_residual_block_forward.7} parent=31 // pred_region
        _
      $region52: #{wide_residual_block_forward.7} parent=31 // pred_fallthru
        _
    $region32: #{wide_residual_block_forward.7} parent=5 // pred_fallthru
      _
    %p612 = scmp.le.s32.totalorder 2, %s12
    // Predicated region
    $region53: #{wide_residual_block_forward.7} parent=5 // pred_check
      %p613 = pneg %p612
    $region54: #{wide_residual_block_forward.7} parent=5 // pred_check_branch
      %615 = sbr.rel (%p613) target = $region56
    $region55: #{wide_residual_block_forward.7} parent=5 // pred_region
      %s616 = ssub.s32 %s12, 2
      // Predicated region
      $region57: #{wide_residual_block_forward.7} parent=55 // pred_check
        %p617 = pneg %p144
      $region58: #{wide_residual_block_forward.7} parent=55 // pred_check_branch
        %619 = sbr.rel (%p617) target = $region60
      $region59: #{wide_residual_block_forward.7} parent=55 // pred_region
        %s620 = smul.u32 8, %s26
        %p621 = scmp.lt.s32.totalorder %s620, 15
        %s622 = scalar_select %p621, %s620, 15
        %p623 = scmp.lt.s32.totalorder %s25, 0
        %s624 = scalar_select %p623, %s25, 0
        %s625 = sadd.s32 %s624, %s622
        %s626 = smul.addr %s625, 4
        %s627 = scalar_lea.vmem %s3, %s626
      $region60: #{wide_residual_block_forward.7} parent=55 // pred_fallthru
        _
      // Predicated region
      $region61: #{wide_residual_block_forward.7} parent=55 // pred_check
        %p628 = pneg %p172
      $region62: #{wide_residual_block_forward.7} parent=55 // pred_check_branch
        %630 = sbr.rel (%p628) target = $region64
      $region63: #{wide_residual_block_forward.7} parent=55 // pred_region
        %p631 = scmp.lt.s32.totalorder %s26, 1
        %s632 = scalar_select %p631, %s26, 1
        %p633 = scmp.lt.s32.totalorder %s25, 0
        %s634 = scalar_select %p633, %s25, 0
        %s635 = sadd.s32 %s634, %s632
        %s636 = scalar_lea.vmem %s4, %s635
      $region64: #{wide_residual_block_forward.7} parent=55 // pred_fallthru
        _
      // Predicated region
      $region65: #{wide_residual_block_forward.7} parent=55 // pred_check
        %p637 = pneg %p200
      $region66: #{wide_residual_block_forward.7} parent=55 // pred_check_branch
        %639 = sbr.rel (%p637) target = $region68
      $region67: #{wide_residual_block_forward.7} parent=55 // pred_region
        %p640 = scmp.lt.s32.totalorder %s26, 1
        %s641 = scalar_select %p640, %s26, 1
        %p642 = scmp.lt.s32.totalorder %s25, 0
        %s643 = scalar_select %p642, %s25, 0
        %s644 = sadd.s32 %s643, %s641
        %s645 = scalar_lea.vmem %s5, %s644
      $region68: #{wide_residual_block_forward.7} parent=55 // pred_fallthru
        _
    $region56: #{wide_residual_block_forward.7} parent=5 // pred_fallthru
      _
  $region6: #{wide_residual_block_forward.7} parent=0 // loop_footer
    %s16 = sadd.s32 1, %s12
  $region7: #{wide_residual_block_forward.7} parent=0 // loop_footer_branch
    %11 = sbr.rel target = $region3
  $region8: #{wide_residual_block_forward.7} parent=0 // loop_exit
    _

// kernel: wide_residual_block_forward.8
$region0: #{wide_residual_block_forward.8}
  #allocation0 [shape = 'u32[]', space=smem, size = 0x4, offset = 0x4, fixed_abs, tag = 'smem constant byte address 0x4 - core index']
  #allocation1 [shape = 'u32[72,128]{1,0:T(1,128)}', space=vmem, size = 0x9000, scoped, tag = 'internal scratch']
  %s0 = inlined_call_operand.vmem [shape: bf16[128,128], index: 0, kind: input, shape index: {}]
  %s1 = inlined_call_operand.vmem [shape: f32[1,128], index: 1, kind: input, shape index: {}]
  %s2 = inlined_call_operand.vmem [shape: f32[1,128], index: 2, kind: input, shape index: {}]
  %s3 = inlined_call_operand.vmem [shape: bf16[128,128], index: 3, kind: output, shape index: {}]
  %s4 = sld [smem:[#allocation0]]
  $region45: #{wide_residual_block_forward.8} parent=0
    _
  %s6 = ssub.s32 1, %s4
  %s7 = scalar_select 0, %s6, %s4
  loop: start=0, step=1, limit=4
  $region2: #{wide_residual_block_forward.8} parent=0 // loop_pre_header
    _
  $region3: #{wide_residual_block_forward.8} parent=0 // loop_header
    %s9 = sphi 0, %s13
    %p10 = scmp.ge.s32.totalorder %s9, 4
    %s16 = sphi 0, %s28
    %s17 = sphi 0, %s24
    %s18 = sphi 0, %s16
    %s19 = sphi 0, %s17
    %s20 = sphi 0, %s18
    %s21 = sphi 0, %s19
    %s33 = sphi 0, %s35
    %s36 = sphi 0, %s33
    %s37 = sphi 0, %s36
    %s53 = sphi 0, %s37
    %s59 = sphi 0, %s61
    %s62 = sphi 0, %s59
    %s63 = sphi 0, %s62
    %s79 = sphi 0, %s63
    %s85 = sphi 0, %s87
    %s88 = sphi 0, %s85
    %s89 = sphi 0, %s88
    %s105 = sphi 0, %s89
    %s113 = sphi 0, %s115
    %s116 = sphi 0, %s113
    %s117 = sphi 0, %s116
    %s133 = sphi 0, %s117
  $region4: #{wide_residual_block_forward.8} parent=0 // loop_header_branch
    %12 = sbr.rel (%p10) target = $region8
  $region5: #{wide_residual_block_forward.8} parent=0 // loop_body
    %s14 = ssub.s32 %s9, 1
    %s15 = ssub.s32 %s9, 2
    %s22 = sadd.s32 1, %s17
    %p23 = scmp.ge.s32.totalorder %s22, 1
    %s24 = scalar_select %p23, 0, %s22
    %s25 = sadd.s32 1, %s16
    %s26 = scalar_select %p23, %s25, %s16
    %p27 = scmp.ge.s32.totalorder %s26, 2
    %s28 = scalar_select %p27, 0, %s26
    %s29 = ssub.s32 %s16, %s28
    %s30 = ssub.s32 %s17, %s24
    %s31 = sor.u32 %s29, %s30
    %p32 = scmp.eq.s32.totalorder %s31, 0
    %s34 = sadd.s32 %s33, 1
    %s35 = scalar_select %p32, %s33, %s34
    %p38 = pneg %p32
    %p39 = scmp.eq.s32.totalorder %s9, 1
    %p40 = por %p38, %p39
    %p41 = scmp.ne.s32.totalorder %s33, %s36
    %p42 = scmp.eq.s32.totalorder %s9, 0
    %p43 = por %p41, %p42
    %p44 = scmp.ne.s32.totalorder %s33, %s36
    %p45 = scmp.eq.s32.totalorder %s14, 1
    %p46 = por %p44, %p45
    %p47 = scmp.ne.s32.totalorder %s36, %s37
    %p48 = scmp.eq.s32.totalorder %s14, 0
    %p49 = por %p47, %p48
    %p50 = scmp.ne.s32.totalorder %s36, %s37
    %p51 = scmp.eq.s32.totalorder %s15, 1
    %p52 = por %p50, %p51
    %p54 = scmp.ne.s32.totalorder %s37, %s53
    %p55 = scmp.eq.s32.totalorder %s15, 0
    %p56 = por %p54, %p55
    %s57 = ssub.s32 %s17, %s24
    %p58 = scmp.eq.s32.totalorder %s57, 0
    %s60 = sadd.s32 %s59, 1
    %s61 = scalar_select %p58, %s59, %s60
    %p64 = pneg %p58
    %p65 = scmp.eq.s32.totalorder %s9, 1
    %p66 = por %p64, %p65
    %p67 = scmp.ne.s32.totalorder %s59, %s62
    %p68 = scmp.eq.s32.totalorder %s9, 0
    %p69 = por %p67, %p68
    %p70 = scmp.ne.s32.totalorder %s59, %s62
    %p71 = scmp.eq.s32.totalorder %s14, 1
    %p72 = por %p70, %p71
    %p73 = scmp.ne.s32.totalorder %s62, %s63
    %p74 = scmp.eq.s32.totalorder %s14, 0
    %p75 = por %p73, %p74
    %p76 = scmp.ne.s32.totalorder %s62, %s63
    %p77 = scmp.eq.s32.totalorder %s15, 1
    %p78 = por %p76, %p77
    %p80 = scmp.ne.s32.totalorder %s63, %s79
    %p81 = scmp.eq.s32.totalorder %s15, 0
    %p82 = por %p80, %p81
    %s83 = ssub.s32 %s17, %s24
    %p84 = scmp.eq.s32.totalorder %s83, 0
    %s86 = sadd.s32 %s85, 1
    %s87 = scalar_select %p84, %s85, %s86
    %p90 = pneg %p84
    %p91 = scmp.eq.s32.totalorder %s9, 1
    %p92 = por %p90, %p91
    %p93 = scmp.ne.s32.totalorder %s85, %s88
    %p94 = scmp.eq.s32.totalorder %s9, 0
    %p95 = por %p93, %p94
    %p96 = scmp.ne.s32.totalorder %s85, %s88
    %p97 = scmp.eq.s32.totalorder %s14, 1
    %p98 = por %p96, %p97
    %p99 = scmp.ne.s32.totalorder %s88, %s89
    %p100 = scmp.eq.s32.totalorder %s14, 0
    %p101 = por %p99, %p100
    %p102 = scmp.ne.s32.totalorder %s88, %s89
    %p103 = scmp.eq.s32.totalorder %s15, 1
    %p104 = por %p102, %p103
    %p106 = scmp.ne.s32.totalorder %s89, %s105
    %p107 = scmp.eq.s32.totalorder %s15, 0
    %p108 = por %p106, %p107
    %s109 = ssub.s32 %s16, %s28
    %s110 = ssub.s32 %s17, %s24
    %s111 = sor.u32 %s109, %s110
    %p112 = scmp.eq.s32.totalorder %s111, 0
    %s114 = sadd.s32 %s113, 1
    %s115 = scalar_select %p112, %s113, %s114
    %p118 = pneg %p112
    %p119 = scmp.eq.s32.totalorder %s9, 1
    %p120 = por %p118, %p119
    %p121 = scmp.ne.s32.totalorder %s113, %s116
    %p122 = scmp.eq.s32.totalorder %s9, 0
    %p123 = por %p121, %p122
    %p124 = scmp.ne.s32.totalorder %s113, %s116
    %p125 = scmp.eq.s32.totalorder %s14, 1
    %p126 = por %p124, %p125
    %p127 = scmp.ne.s32.totalorder %s116, %s117
    %p128 = scmp.eq.s32.totalorder %s14, 0
    %p129 = por %p127, %p128
    %p130 = scmp.ne.s32.totalorder %s116, %s117
    %p131 = scmp.eq.s32.totalorder %s15, 1
    %p132 = por %p130, %p131
    %p134 = scmp.ne.s32.totalorder %s117, %s133
    %p135 = scmp.eq.s32.totalorder %s15, 0
    %p136 = por %p134, %p135
    %p137 = scmp.le.s32.totalorder 1, %s9
    %p138 = scmp.lt.s32.totalorder %s9, 3
    %p139 = pnand %p137, %p138
    %p140 = pneg %p139
    // Predicated region
    $region9: #{wide_residual_block_forward.8} parent=5 // pred_check
      _
    $region10: #{wide_residual_block_forward.8} parent=5 // pred_check_branch
      %142 = sbr.rel (%p139) target = $region12
    $region11: #{wide_residual_block_forward.8} parent=5 // pred_region
      %s143 = ssub.s32 %s9, 1
      // Predicated region
      $region13: #{wide_residual_block_forward.8} parent=11 // pred_check
        %p144 = pneg %p75
      $region14: #{wide_residual_block_forward.8} parent=11 // pred_check_branch
        %146 = sbr.rel (%p144) target = $region16
      $region15: #{wide_residual_block_forward.8} parent=11 // pred_region
        %p147 = scmp.lt.s32.totalorder %s19, 0
        %s148 = scalar_select %p147, %s19, 0
        %s149 = scalar_lea.vmem %s1, %s148
      $region16: #{wide_residual_block_forward.8} parent=11 // pred_fallthru
        _
      // Predicated region
      $region17: #{wide_residual_block_forward.8} parent=11 // pred_check
        %p150 = pneg %p101
      $region18: #{wide_residual_block_forward.8} parent=11 // pred_check_branch
        %152 = sbr.rel (%p150) target = $region20
      $region19: #{wide_residual_block_forward.8} parent=11 // pred_region
        %p153 = scmp.lt.s32.totalorder %s19, 0
        %s154 = scalar_select %p153, %s19, 0
        %s155 = scalar_lea.vmem %s2, %s154
      $region20: #{wide_residual_block_forward.8} parent=11 // pred_fallthru
        _
    $region12: #{wide_residual_block_forward.8} parent=5 // pred_fallthru
      _
    %p156 = scmp.lt.s32.totalorder %s9, 2
    // Predicated region
    $region21: #{wide_residual_block_forward.8} parent=5 // pred_check
      %p157 = pneg %p156
    $region22: #{wide_residual_block_forward.8} parent=5 // pred_check_branch
      %159 = sbr.rel (%p157) target = $region24
    $region23: #{wide_residual_block_forward.8} parent=5 // pred_region
      // Predicated region
      $region25: #{wide_residual_block_forward.8} parent=23 // pred_check
        %p160 = pneg %p43
      $region26: #{wide_residual_block_forward.8} parent=23 // pred_check_branch
        %162 = sbr.rel (%p160) target = $region28
      $region27: #{wide_residual_block_forward.8} parent=23 // pred_region
        %s163 = smul.u32 8, %s16
        %p164 = scmp.lt.s32.totalorder %s163, 15
        %s165 = scalar_select %p164, %s163, 15
        %p166 = scmp.lt.s32.totalorder %s17, 0
        %s167 = scalar_select %p166, %s17, 0
        %s168 = sadd.s32 %s167, %s165
        %s169 = smul.addr %s168, 4
        %s170 = scalar_lea.vmem %s0, %s169
        %s171 = smul.u32 8, %s16
      $region28: #{wide_residual_block_forward.8} parent=23 // pred_fallthru
        _
    $region24: #{wide_residual_block_forward.8} parent=5 // pred_fallthru
      _
    %p172 = scmp.le.s32.totalorder 1, %s9
    %p173 = scmp.lt.s32.totalorder %s9, 3
    %p174 = pnand %p172, %p173
    %p175 = pneg %p174
    // Predicated region
    $region29: #{wide_residual_block_forward.8} parent=5 // pred_check
      _
    $region30: #{wide_residual_block_forward.8} parent=5 // pred_check_branch
      %177 = sbr.rel (%p174) target = $region32
    $region31: #{wide_residual_block_forward.8} parent=5 // pred_region
      %s178 = ssub.s32 %s9, 1
      %s179 = smul.u32 8, %s18
      %p180 = scmp.lt.s32.totalorder %s179, 15
      %s181 = scalar_select %p180, %s179, 15
      %p182 = scmp.lt.s32.totalorder %s19, 0
      %s183 = scalar_select %p182, %s19, 0
      %s184 = sadd.s32 %s183, %s181
      %s185 = smul.addr %s184, 4
      %s186 = scalar_lea.vmem %s0, %s185
      %p187 = pneg %p49
      %p188 = pneg %p46
      %p189 = scmp.lt.s32.totalorder %s19, 0
      %s190 = scalar_select %p189, %s19, 0
      %s191 = scalar_lea.vmem %s1, %s190
      %p192 = pneg %p75
      %p193 = pneg %p72
      %p194 = scmp.lt.s32.totalorder %s19, 0
      %s195 = scalar_select %p194, %s19, 0
      %s196 = scalar_lea.vmem %s2, %s195
      %p197 = pneg %p101
      %p198 = pneg %p98
      %p199 = pneg %p129
      %p200 = pneg %p126
      %s201 = smul.u32 8, %s18
      %p202 = scmp.lt.s32.totalorder %s201, 15
      %s203 = scalar_select %p202, %s201, 15
      %p204 = scmp.lt.s32.totalorder %s19, 0
      %s205 = scalar_select %p204, %s19, 0
      %s206 = sadd.s32 %s205, %s203
      %s207 = smul.addr %s206, 4
      %s208 = scalar_lea.vmem %s3, %s207
      %s209 = smul.u32 8, %s18
      %p210 = scmp.lt.s32.totalorder %s209, 15
      %s211 = scalar_select %p210, %s209, 15
      %p212 = scmp.lt.s32.totalorder %s19, 0
      %s213 = scalar_select %p212, %s19, 0
      %s214 = sadd.s32 %s213, %s211
      %s215 = smul.addr %s214, 4
      %s216 = scalar_lea.vmem %s0, %s215
      %s217 = smul.u32 8, %s18
      %p218 = scmp.lt.s32.totalorder %s19, 0
      %s219 = scalar_select %p218, %s19, 0
      %s220 = scalar_lea.vmem %s1, %s219
      %p221 = scmp.lt.s32.totalorder %s19, 0
      %s222 = scalar_select %p221, %s19, 0
      %s223 = scalar_lea.vmem %s2, %s222
      %s224 = smul.u32 8, %s18
      %p225 = scmp.lt.s32.totalorder %s224, 15
      %s226 = scalar_select %p225, %s224, 15
      %p227 = scmp.lt.s32.totalorder %s19, 0
      %s228 = scalar_select %p227, %s19, 0
      %s229 = sadd.s32 %s228, %s226
      %s230 = smul.addr %s229, 4
      %s231 = scalar_lea.vmem %s3, %s230
      %s232 = smul.u32 8, %s18
      %v233 = vld [vmem:[%s216] sm:$0xf]
      %v234 = vld [vmem:[%s216 + $0x4] sm:$0xf]
      %v235 = vld [vmem:[%s216 + $0x8] sm:$0xf]
      %v236 = vld [vmem:[%s216 + $0xc] sm:$0xf]
      %v237 = vld [vmem:[%s216 + $0x10] sm:$0xf]
      %v238 = vld [vmem:[%s216 + $0x14] sm:$0xf]
      %v239 = vld [vmem:[%s216 + $0x18] sm:$0xf]
      %v240 = vld [vmem:[%s216 + $0x1c] sm:$0xf]
      %v241 = vunpack.c.l.bf16 %v233
      %v242 = vunpack.c.l.bf16 %v234
      %v243 = vunpack.c.l.bf16 %v235
      %v244 = vunpack.c.l.bf16 %v236
      %v245 = vunpack.c.l.bf16 %v237
      %v246 = vunpack.c.l.bf16 %v238
      %v247 = vunpack.c.l.bf16 %v239
      %v248 = vunpack.c.l.bf16 %v240
      %v249 = vld [vmem:[%s220] sm:$0x1]
      %v251 = vperm.slane %v249, 0
      %v253 = vmul.f32 %v241, %v251
      %v254 = vmul.f32 %v242, %v251
      %v255 = vmul.f32 %v243, %v251
      %v256 = vmul.f32 %v244, %v251
      %v257 = vmul.f32 %v245, %v251
      %v258 = vmul.f32 %v246, %v251
      %v259 = vmul.f32 %v247, %v251
      %v260 = vmul.f32 %v248, %v251
      %v261 = vld [vmem:[%s223] sm:$0x1]
      %v263 = vperm.slane %v261, 0
      %v265 = vadd.f32 %v253, %v263
      %v266 = vadd.f32 %v254, %v263
      %v267 = vadd.f32 %v255, %v263
      %v268 = vadd.f32 %v256, %v263
      %v269 = vadd.f32 %v257, %v263
      %v270 = vadd.f32 %v258, %v263
      %v271 = vadd.f32 %v259, %v263
      %v272 = vadd.f32 %v260, %v263
      %v273 = vmax.f32 %v265, 0.0
      %v274 = vmax.f32 %v266, 0.0
      %v275 = vmax.f32 %v267, 0.0
      %v276 = vmax.f32 %v268, 0.0
      %v277 = vmax.f32 %v269, 0.0
      %v278 = vmax.f32 %v270, 0.0
      %v279 = vmax.f32 %v271, 0.0
      %v280 = vmax.f32 %v272, 0.0
      %v281 = vpack.c.bf16 %v273, %v273
      %v282 = vpack.c.bf16 %v274, %v274
      %v283 = vpack.c.bf16 %v275, %v275
      %v284 = vpack.c.bf16 %v276, %v276
      %v285 = vpack.c.bf16 %v277, %v277
      %v286 = vpack.c.bf16 %v278, %v278
      %v287 = vpack.c.bf16 %v279, %v279
      %v288 = vpack.c.bf16 %v280, %v280
      %289 = vst [vmem:[%s231] sm:$0xf] %v281
      %290 = vst [vmem:[%s231 + $0x4] sm:$0xf] %v282
      %291 = vst [vmem:[%s231 + $0x8] sm:$0xf] %v283
      %292 = vst [vmem:[%s231 + $0xc] sm:$0xf] %v284
      %293 = vst [vmem:[%s231 + $0x10] sm:$0xf] %v285
      %294 = vst [vmem:[%s231 + $0x14] sm:$0xf] %v286
      %295 = vst [vmem:[%s231 + $0x18] sm:$0xf] %v287
      %296 = vst [vmem:[%s231 + $0x1c] sm:$0xf] %v288
      %s297 = smul.u32 8, %s18
      %p298 = scmp.lt.s32.totalorder %s297, 15
      %s299 = scalar_select %p298, %s297, 15
      %p300 = scmp.lt.s32.totalorder %s19, 0
      %s301 = scalar_select %p300, %s19, 0
      %s302 = sadd.s32 %s301, %s299
      %s303 = smul.addr %s302, 4
      %s304 = scalar_lea.vmem %s3, %s303
      // Predicated region
      $region33: #{wide_residual_block_forward.8} parent=31 // pred_check
        %p305 = pneg %p126
      $region34: #{wide_residual_block_forward.8} parent=31 // pred_check_branch
        %307 = sbr.rel (%p305) target = $region36
      $region35: #{wide_residual_block_forward.8} parent=31 // pred_region
        %s308 = smul.u32 8, %s18
      $region36: #{wide_residual_block_forward.8} parent=31 // pred_fallthru
        _
    $region32: #{wide_residual_block_forward.8} parent=5 // pred_fallthru
      _
    %p309 = scmp.le.s32.totalorder 2, %s9
    // Predicated region
    $region37: #{wide_residual_block_forward.8} parent=5 // pred_check
      %p310 = pneg %p309
    $region38: #{wide_residual_block_forward.8} parent=5 // pred_check_branch
      %312 = sbr.rel (%p310) target = $region40
    $region39: #{wide_residual_block_forward.8} parent=5 // pred_region
      %s313 = ssub.s32 %s9, 2
      // Predicated region
      $region41: #{wide_residual_block_forward.8} parent=39 // pred_check
        %p314 = pneg %p132
      $region42: #{wide_residual_block_forward.8} parent=39 // pred_check_branch
        %316 = sbr.rel (%p314) target = $region44
      $region43: #{wide_residual_block_forward.8} parent=39 // pred_region
        %s317 = smul.u32 8, %s20
        %p318 = scmp.lt.s32.totalorder %s317, 15
        %s319 = scalar_select %p318, %s317, 15
        %p320 = scmp.lt.s32.totalorder %s21, 0
        %s321 = scalar_select %p320, %s21, 0
        %s322 = sadd.s32 %s321, %s319
        %s323 = smul.addr %s322, 4
        %s324 = scalar_lea.vmem %s3, %s323
      $region44: #{wide_residual_block_forward.8} parent=39 // pred_fallthru
        _
    $region40: #{wide_residual_block_forward.8} parent=5 // pred_fallthru
      _
  $region6: #{wide_residual_block_forward.8} parent=0 // loop_footer
    %s13 = sadd.s32 1, %s9
  $region7: #{wide_residual_block_forward.8} parent=0 // loop_footer_branch
    %8 = sbr.rel target = $region3
  $region8: #{wide_residual_block_forward.8} parent=0 // loop_exit
    _

// kernel: wide_residual_block_forward.9
$region0: #{wide_residual_block_forward.9}
  #allocation0 [shape = 'u32[]', space=smem, size = 0x4, offset = 0x4, fixed_abs, tag = 'smem constant byte address 0x4 - core index']
  #allocation1 [shape = 'u32[72,128]{1,0:T(1,128)}', space=vmem, size = 0x9000, scoped, tag = 'internal scratch']
  #allocation2 [shape = 'f32[64,128]{1,0:T(8,128)}', space=vmem, size = 0x8000, scoped, tag = 'scratch operand']
  %s0 = inlined_call_operand.vmem [shape: bf16[128,128], index: 0, kind: input, shape index: {}]
  %s1 = inlined_call_operand.vmem [shape: bf16[128,128], index: 1, kind: input, shape index: {}]
  %s2 = inlined_call_operand.vmem [shape: f32[1,128], index: 2, kind: input, shape index: {}]
  %s3 = inlined_call_operand.vmem [shape: f32[128,128], index: 3, kind: output, shape index: {}]
  %s4 = sld [smem:[#allocation0]]
  $region53: #{wide_residual_block_forward.9} parent=0
    _
  %s6 = ssub.s32 1, %s4
  %s7 = scalar_select 0, %s6, %s4
  loop: start=0, step=1, limit=4
  $region2: #{wide_residual_block_forward.9} parent=0 // loop_pre_header
    _
  $region3: #{wide_residual_block_forward.9} parent=0 // loop_header
    %s9 = sphi 0, %s13
    %p10 = scmp.ge.s32.totalorder %s9, 4
    %s16 = sphi 0, %s35
    %s17 = sphi 0, %s31
    %s18 = sphi 0, %s27
    %s19 = sphi 0, %s16
    %s20 = sphi 0, %s17
    %s21 = sphi 0, %s18
    %s22 = sphi 0, %s19
    %s23 = sphi 0, %s20
    %s24 = sphi 0, %s21
    %s40 = sphi 0, %s42
    %s43 = sphi 0, %s40
    %s44 = sphi 0, %s43
    %s60 = sphi 0, %s44
    %s68 = sphi 0, %s70
    %s71 = sphi 0, %s68
    %s72 = sphi 0, %s71
    %s88 = sphi 0, %s72
    %s94 = sphi 0, %s96
    %s97 = sphi 0, %s94
    %s98 = sphi 0, %s97
    %s114 = sphi 0, %s98
    %s122 = sphi 0, %s124
    %s125 = sphi 0, %s122
    %s126 = sphi 0, %s125
    %s142 = sphi 0, %s126
  $region4: #{wide_residual_block_forward.9} parent=0 // loop_header_branch
    %12 = sbr.rel (%p10) target = $region8
  $region5: #{wide_residual_block_forward.9} parent=0 // loop_body
    %s14 = ssub.s32 %s9, 1
    %s15 = ssub.s32 %s9, 2
    %s25 = sadd.s32 1, %s18
    %p26 = scmp.ge.s32.totalorder %s25, 1
    %s27 = scalar_select %p26, 0, %s25
    %s28 = sadd.s32 1, %s17
    %s29 = scalar_select %p26, %s28, %s17
    %p30 = scmp.ge.s32.totalorder %s29, 2
    %s31 = scalar_select %p30, 0, %s29
    %s32 = sadd.s32 1, %s16
    %s33 = scalar_select %p30, %s32, %s16
    %p34 = scmp.ge.s32.totalorder %s33, 1
    %s35 = scalar_select %p34, 0, %s33
    %s36 = ssub.s32 %s17, %s31
    %s37 = ssub.s32 %s18, %s27
    %s38 = sor.u32 %s36, %s37
    %p39 = scmp.eq.s32.totalorder %s38, 0
    %s41 = sadd.s32 %s40, 1
    %s42 = scalar_select %p39, %s40, %s41
    %p45 = pneg %p39
    %p46 = scmp.eq.s32.totalorder %s9, 1
    %p47 = por %p45, %p46
    %p48 = scmp.ne.s32.totalorder %s40, %s43
    %p49 = scmp.eq.s32.totalorder %s9, 0
    %p50 = por %p48, %p49
    %p51 = scmp.ne.s32.totalorder %s40, %s43
    %p52 = scmp.eq.s32.totalorder %s14, 1
    %p53 = por %p51, %p52
    %p54 = scmp.ne.s32.totalorder %s43, %s44
    %p55 = scmp.eq.s32.totalorder %s14, 0
    %p56 = por %p54, %p55
    %p57 = scmp.ne.s32.totalorder %s43, %s44
    %p58 = scmp.eq.s32.totalorder %s15, 1
    %p59 = por %p57, %p58
    %p61 = scmp.ne.s32.totalorder %s44, %s60
    %p62 = scmp.eq.s32.totalorder %s15, 0
    %p63 = por %p61, %p62
    %s64 = ssub.s32 %s18, %s27
    %s65 = ssub.s32 %s16, %s35
    %s66 = sor.u32 %s64, %s65
    %p67 = scmp.eq.s32.totalorder %s66, 0
    %s69 = sadd.s32 %s68, 1
    %s70 = scalar_select %p67, %s68, %s69
    %p73 = pneg %p67
    %p74 = scmp.eq.s32.totalorder %s9, 1
    %p75 = por %p73, %p74
    %p76 = scmp.ne.s32.totalorder %s68, %s71
    %p77 = scmp.eq.s32.totalorder %s9, 0
    %p78 = por %p76, %p77
    %p79 = scmp.ne.s32.totalorder %s68, %s71
    %p80 = scmp.eq.s32.totalorder %s14, 1
    %p81 = por %p79, %p80
    %p82 = scmp.ne.s32.totalorder %s71, %s72
    %p83 = scmp.eq.s32.totalorder %s14, 0
    %p84 = por %p82, %p83
    %p85 = scmp.ne.s32.totalorder %s71, %s72
    %p86 = scmp.eq.s32.totalorder %s15, 1
    %p87 = por %p85, %p86
    %p89 = scmp.ne.s32.totalorder %s72, %s88
    %p90 = scmp.eq.s32.totalorder %s15, 0
    %p91 = por %p89, %p90
    %s92 = ssub.s32 %s16, %s35
    %p93 = scmp.eq.s32.totalorder %s92, 0
    %s95 = sadd.s32 %s94, 1
    %s96 = scalar_select %p93, %s94, %s95
    %p99 = pneg %p93
    %p100 = scmp.eq.s32.totalorder %s9, 1
    %p101 = por %p99, %p100
    %p102 = scmp.ne.s32.totalorder %s94, %s97
    %p103 = scmp.eq.s32.totalorder %s9, 0
    %p104 = por %p102, %p103
    %p105 = scmp.ne.s32.totalorder %s94, %s97
    %p106 = scmp.eq.s32.totalorder %s14, 1
    %p107 = por %p105, %p106
    %p108 = scmp.ne.s32.totalorder %s97, %s98
    %p109 = scmp.eq.s32.totalorder %s14, 0
    %p110 = por %p108, %p109
    %p111 = scmp.ne.s32.totalorder %s97, %s98
    %p112 = scmp.eq.s32.totalorder %s15, 1
    %p113 = por %p111, %p112
    %p115 = scmp.ne.s32.totalorder %s98, %s114
    %p116 = scmp.eq.s32.totalorder %s15, 0
    %p117 = por %p115, %p116
    %s118 = ssub.s32 %s17, %s31
    %s119 = ssub.s32 %s16, %s35
    %s120 = sor.u32 %s118, %s119
    %p121 = scmp.eq.s32.totalorder %s120, 0
    %s123 = sadd.s32 %s122, 1
    %s124 = scalar_select %p121, %s122, %s123
    %p127 = pneg %p121
    %p128 = scmp.eq.s32.totalorder %s9, 1
    %p129 = por %p127, %p128
    %p130 = scmp.ne.s32.totalorder %s122, %s125
    %p131 = scmp.eq.s32.totalorder %s9, 0
    %p132 = por %p130, %p131
    %p133 = scmp.ne.s32.totalorder %s122, %s125
    %p134 = scmp.eq.s32.totalorder %s14, 1
    %p135 = por %p133, %p134
    %p136 = scmp.ne.s32.totalorder %s125, %s126
    %p137 = scmp.eq.s32.totalorder %s14, 0
    %p138 = por %p136, %p137
    %p139 = scmp.ne.s32.totalorder %s125, %s126
    %p140 = scmp.eq.s32.totalorder %s15, 1
    %p141 = por %p139, %p140
    %p143 = scmp.ne.s32.totalorder %s126, %s142
    %p144 = scmp.eq.s32.totalorder %s15, 0
    %p145 = por %p143, %p144
    %p146 = scmp.le.s32.totalorder 1, %s9
    %p147 = scmp.lt.s32.totalorder %s9, 3
    %p148 = pnand %p146, %p147
    %p149 = pneg %p148
    // Predicated region
    $region9: #{wide_residual_block_forward.9} parent=5 // pred_check
      _
    $region10: #{wide_residual_block_forward.9} parent=5 // pred_check_branch
      %151 = sbr.rel (%p148) target = $region12
    $region11: #{wide_residual_block_forward.9} parent=5 // pred_region
      %s152 = ssub.s32 %s9, 1
      // Predicated region
      $region13: #{wide_residual_block_forward.9} parent=11 // pred_check
        %p153 = pneg %p84
      $region14: #{wide_residual_block_forward.9} parent=11 // pred_check_branch
        %155 = sbr.rel (%p153) target = $region16
      $region15: #{wide_residual_block_forward.9} parent=11 // pred_region
        %s156 = smul.u32 16, %s21
        %p157 = scmp.lt.s32.totalorder %s156, 15
        %s158 = scalar_select %p157, %s156, 15
        %p159 = scmp.lt.s32.totalorder %s19, 0
        %s160 = scalar_select %p159, %s19, 0
        %s161 = sadd.s32 %s160, %s158
        %s162 = smul.addr %s161, 4
        %s163 = scalar_lea.vmem %s1, %s162
        %s164 = smul.u32 16, %s21
      $region16: #{wide_residual_block_forward.9} parent=11 // pred_fallthru
        _
      // Predicated region
      $region17: #{wide_residual_block_forward.9} parent=11 // pred_check
        %p165 = pneg %p110
      $region18: #{wide_residual_block_forward.9} parent=11 // pred_check_branch
        %167 = sbr.rel (%p165) target = $region20
      $region19: #{wide_residual_block_forward.9} parent=11 // pred_region
        %p168 = scmp.lt.s32.totalorder %s19, 0
        %s169 = scalar_select %p168, %s19, 0
        %s170 = scalar_lea.vmem %s2, %s169
      $region20: #{wide_residual_block_forward.9} parent=11 // pred_fallthru
        _
    $region12: #{wide_residual_block_forward.9} parent=5 // pred_fallthru
      _
    %p171 = scmp.lt.s32.totalorder %s9, 2
    // Predicated region
    $region21: #{wide_residual_block_forward.9} parent=5 // pred_check
      %p172 = pneg %p171
    $region22: #{wide_residual_block_forward.9} parent=5 // pred_check_branch
      %174 = sbr.rel (%p172) target = $region24
    $region23: #{wide_residual_block_forward.9} parent=5 // pred_region
      // Predicated region
      $region25: #{wide_residual_block_forward.9} parent=23 // pred_check
        %p175 = pneg %p50
      $region26: #{wide_residual_block_forward.9} parent=23 // pred_check_branch
        %177 = sbr.rel (%p175) target = $region28
      $region27: #{wide_residual_block_forward.9} parent=23 // pred_region
        %s178 = smul.u32 8, %s17
        %p179 = scmp.lt.s32.totalorder %s178, 15
        %s180 = scalar_select %p179, %s178, 15
        %p181 = scmp.lt.s32.totalorder %s18, 0
        %s182 = scalar_select %p181, %s18, 0
        %s183 = sadd.s32 %s182, %s180
        %s184 = smul.addr %s183, 4
        %s185 = scalar_lea.vmem %s0, %s184
        %s186 = smul.u32 8, %s17
      $region28: #{wide_residual_block_forward.9} parent=23 // pred_fallthru
        _
    $region24: #{wide_residual_block_forward.9} parent=5 // pred_fallthru
      _
    %p187 = scmp.le.s32.totalorder 1, %s9
    %p188 = scmp.lt.s32.totalorder %s9, 3
    %p189 = pnand %p187, %p188
    %p190 = pneg %p189
    // Predicated region
    $region29: #{wide_residual_block_forward.9} parent=5 // pred_check
      _
    $region30: #{wide_residual_block_forward.9} parent=5 // pred_check_branch
      %192 = sbr.rel (%p189) target = $region32
    $region31: #{wide_residual_block_forward.9} parent=5 // pred_region
      %s193 = ssub.s32 %s9, 1
      %s194 = smul.u32 8, %s20
      %p195 = scmp.lt.s32.totalorder %s194, 15
      %s196 = scalar_select %p195, %s194, 15
      %p197 = scmp.lt.s32.totalorder %s21, 0
      %s198 = scalar_select %p197, %s21, 0
      %s199 = sadd.s32 %s198, %s196
      %s200 = smul.addr %s199, 4
      %s201 = scalar_lea.vmem %s0, %s200
      %p202 = pneg %p56
      %p203 = pneg %p53
      %s204 = smul.u32 16, %s21
      %p205 = scmp.lt.s32.totalorder %s204, 15
      %s206 = scalar_select %p205, %s204, 15
      %p207 = scmp.lt.s32.totalorder %s19, 0
      %s208 = scalar_select %p207, %s19, 0
      %s209 = sadd.s32 %s208, %s206
      %s210 = smul.addr %s209, 4
      %s211 = scalar_lea.vmem %s1, %s210
      %p212 = pneg %p84
      %p213 = pneg %p81
      %p214 = scmp.lt.s32.totalorder %s19, 0
      %s215 = scalar_select %p214, %s19, 0
      %s216 = scalar_lea.vmem %s2, %s215
      %p217 = pneg %p110
      %p218 = pneg %p107
      %p219 = pneg %p138
      %p220 = pneg %p135
      %s221 = smul.u32 8, %s20
      %p222 = scmp.lt.s32.totalorder %s221, 15
      %s223 = scalar_select %p222, %s221, 15
      %p224 = scmp.lt.s32.totalorder %s19, 0
      %s225 = scalar_select %p224, %s19, 0
      %s226 = sadd.s32 %s225, %s223
      %s227 = smul.addr %s226, 8
      %s228 = scalar_lea.vmem %s3, %s227
      %s229 = smul.u32 8, %s20
      %p230 = scmp.lt.s32.totalorder %s229, 15
      %s231 = scalar_select %p230, %s229, 15
      %p232 = scmp.lt.s32.totalorder %s21, 0
      %s233 = scalar_select %p232, %s21, 0
      %s234 = sadd.s32 %s233, %s231
      %s235 = smul.addr %s234, 4
      %s236 = scalar_lea.vmem %s0, %s235
      %s237 = smul.u32 8, %s20
      %s238 = smul.u32 16, %s21
      %p239 = scmp.lt.s32.totalorder %s238, 15
      %s240 = scalar_select %p239, %s238, 15
      %p241 = scmp.lt.s32.totalorder %s19, 0
      %s242 = scalar_select %p241, %s19, 0
      %s243 = sadd.s32 %s242, %s240
      %s244 = smul.addr %s243, 4
      %s245 = scalar_lea.vmem %s1, %s244
      %s246 = smul.u32 16, %s21
      %p247 = scmp.lt.s32.totalorder %s19, 0
      %s248 = scalar_select %p247, %s19, 0
      %s249 = scalar_lea.vmem %s2, %s248
      %s250 = smul.u32 8, %s20
      %p251 = scmp.lt.s32.totalorder %s250, 15
      %s252 = scalar_select %p251, %s250, 15
      %p253 = scmp.lt.s32.totalorder %s19, 0
      %s254 = scalar_select %p253, %s19, 0
      %s255 = sadd.s32 %s254, %s252
      %s256 = smul.addr %s255, 8
      %s257 = scalar_lea.vmem %s3, %s256
      %s258 = smul.u32 8, %s20
      %p259 = scmp.eq.s32.totalorder %s21, 0
      // Predicated region
      $region33: #{wide_residual_block_forward.9} parent=31 // pred_check
        %p260 = pneg %p259
      $region34: #{wide_residual_block_forward.9} parent=31 // pred_check_branch
        %262 = sbr.rel (%p260) target = $region36
      $region35: #{wide_residual_block_forward.9} parent=31 // pred_region
        %263 = vst [vmem:[#allocation2] sm:$0xff] 0.0
        %264 = vst [vmem:[#allocation2 + $0x8] sm:$0xff] 0.0
        %265 = vst [vmem:[#allocation2 + $0x10] sm:$0xff] 0.0
        %266 = vst [vmem:[#allocation2 + $0x18] sm:$0xff] 0.0
        %267 = vst [vmem:[#allocation2 + $0x20] sm:$0xff] 0.0
        %268 = vst [vmem:[#allocation2 + $0x28] sm:$0xff] 0.0
        %269 = vst [vmem:[#allocation2 + $0x30] sm:$0xff] 0.0
        %270 = vst [vmem:[#allocation2 + $0x38] sm:$0xff] 0.0
      $region36: #{wide_residual_block_forward.9} parent=31 // pred_fallthru
        _
      %v271 = vld [vmem:[#allocation2] sm:$0xff]
      %v272 = vld [vmem:[#allocation2 + $0x8] sm:$0xff]
      %v273 = vld [vmem:[#allocation2 + $0x10] sm:$0xff]
      %v274 = vld [vmem:[#allocation2 + $0x18] sm:$0xff]
      %v275 = vld [vmem:[#allocation2 + $0x20] sm:$0xff]
      %v276 = vld [vmem:[#allocation2 + $0x28] sm:$0xff]
      %v277 = vld [vmem:[#allocation2 + $0x30] sm:$0xff]
      %v278 = vld [vmem:[#allocation2 + $0x38] sm:$0xff]
      %v279 = vld [vmem:[%s236] sm:$0xf]
      %v280 = vld [vmem:[%s236 + $0x4] sm:$0xf]
      %v281 = vld [vmem:[%s236 + $0x8] sm:$0xf]
      %v282 = vld [vmem:[%s236 + $0xc] sm:$0xf]
      %v283 = vld [vmem:[%s236 + $0x10] sm:$0xf]
      %v284 = vld [vmem:[%s236 + $0x14] sm:$0xf]
      %v285 = vld [vmem:[%s236 + $0x18] sm:$0xf]
      %v286 = vld [vmem:[%s236 + $0x1c] sm:$0xf]
      %v287 = vld [vmem:[%s245] sm:$0xf]
      %v288 = vld [vmem:[%s245 + $0x4] sm:$0xf]
      %v289 = vld [vmem:[%s245 + $0x8] sm:$0xf]
      %v290 = vld [vmem:[%s245 + $0xc] sm:$0xf]
      %v291 = vld [vmem:[%s245 + $0x10] sm:$0xf]
      %v292 = vld [vmem:[%s245 + $0x14] sm:$0xf]
      %v293 = vld [vmem:[%s245 + $0x18] sm:$0xf]
      %v294 = vld [vmem:[%s245 + $0x1c] sm:$0xf]
      %v295 = vld [vmem:[%s245 + $0x20] sm:$0xf]
      %v296 = vld [vmem:[%s245 + $0x24] sm:$0xf]
      %v297 = vld [vmem:[%s245 + $0x28] sm:$0xf]
      %v298 = vld [vmem:[%s245 + $0x2c] sm:$0xf]
      %v299 = vld [vmem:[%s245 + $0x30] sm:$0xf]
      %v300 = vld [vmem:[%s245 + $0x34] sm:$0xf]
      %v301 = vld [vmem:[%s245 + $0x38] sm:$0xf]
      %v302 = vld [vmem:[%s245 + $0x3c] sm:$0xf]
      %v311 = vunpack.c.l.b16 %v279
      %v312 = vunpack.c.l.b16 %v280
      %v313 = vunpack.c.l.b16 %v281
      %v314 = vunpack.c.l.b16 %v282
      %v315 = vunpack.c.l.b16 %v283
      %v316 = vunpack.c.l.b16 %v284
      %v317 = vunpack.c.l.b16 %v285
      %v318 = vunpack.c.l.b16 %v286
      %v319 = vpack.c.b16 %v312, %v311
      %v320 = vpack.c.b16 %v314, %v313
      %v321 = vpack.c.b16 %v316, %v315
      %v322 = vpack.c.b16 %v318, %v317
      %v343 = vunpack.c.l.b16 %v287
      %v344 = vunpack.c.l.b16 %v288
      %v345 = vunpack.c.l.b16 %v289
      %v346 = vunpack.c.l.b16 %v290
      %v347 = vunpack.c.l.b16 %v291
      %v348 = vunpack.c.l.b16 %v292
      %v349 = vunpack.c.l.b16 %v293
      %v350 = vunpack.c.l.b16 %v294
      %v351 = vunpack.c.l.b16 %v295
      %v352 = vunpack.c.l.b16 %v296
      %v353 = vunpack.c.l.b16 %v297
      %v354 = vunpack.c.l.b16 %v298
      %v355 = vunpack.c.l.b16 %v299
      %v356 = vunpack.c.l.b16 %v300
      %v357 = vunpack.c.l.b16 %v301
      %v358 = vunpack.c.l.b16 %v302
      %v359 = vpack.c.b16 %v344, %v343
      %v360 = vpack.c.b16 %v346, %v345
      %v361 = vpack.c.b16 %v348, %v347
      %v362 = vpack.c.b16 %v350, %v349
      %v363 = vpack.c.b16 %v352, %v351
      %v364 = vpack.c.b16 %v354, %v353
      %v365 = vpack.c.b16 %v356, %v355
      %v366 = vpack.c.b16 %v358, %v357
      %375 = vmatpush.bf16.msra.mxu0 %v366
      %376 = vmatpush.bf16.msra.mxu0 %v365
      %377 = vmatpush.bf16.msra.mxu0 %v364
      %378 = vmatpush.bf16.msra.mxu0 %v363
      %379 = vmatpush.bf16.msra.mxu0 %v362
      %380 = vmatpush.bf16.msra.mxu0 %v361
      %381 = vmatpush.bf16.msra.mxu0 %v360
      %382 = vmatpush.bf16.msra.mxu0 %v359
      %383 = vmatmul.bf16.gmra.mxu0 %v319
      %v384 = vpop.f32.mrf.mxu0
      %v385 = vadd.f32 0.0, %v384
      %v386 = vpop.f32.mrf.mxu0
      %v387 = vadd.f32 0.0, %v386
      %388 = vmatmul.bf16.gmra.mxu0 %v320
      %v389 = vpop.f32.mrf.mxu0
      %v390 = vadd.f32 0.0, %v389
      %v391 = vpop.f32.mrf.mxu0
      %v392 = vadd.f32 0.0, %v391
      %393 = vmatmul.bf16.gmra.mxu0 %v321
      %v394 = vpop.f32.mrf.mxu0
      %v395 = vadd.f32 0.0, %v394
      %v396 = vpop.f32.mrf.mxu0
      %v397 = vadd.f32 0.0, %v396
      %398 = vmatmul.bf16.gmra.mxu0 %v322
      %v399 = vpop.f32.mrf.mxu0
      %v400 = vadd.f32 0.0, %v399
      %v401 = vpop.f32.mrf.mxu0
      %v402 = vadd.f32 0.0, %v401
      %403 = vdwg.mxu0
      %v404 = vadd.f32 %v271, %v385
      %v405 = vadd.f32 %v272, %v387
      %v406 = vadd.f32 %v273, %v390
      %v407 = vadd.f32 %v274, %v392
      %v408 = vadd.f32 %v275, %v395
      %v409 = vadd.f32 %v276, %v397
      %v410 = vadd.f32 %v277, %v400
      %v411 = vadd.f32 %v278, %v402
      %412 = vst [vmem:[#allocation2] sm:$0xff] %v404
      %413 = vst [vmem:[#allocation2 + $0x8] sm:$0xff] %v405
      %414 = vst [vmem:[#allocation2 + $0x10] sm:$0xff] %v406
      %415 = vst [vmem:[#allocation2 + $0x18] sm:$0xff] %v407
      %416 = vst [vmem:[#allocation2 + $0x20] sm:$0xff] %v408
      %417 = vst [vmem:[#allocation2 + $0x28] sm:$0xff] %v409
      %418 = vst [vmem:[#allocation2 + $0x30] sm:$0xff] %v410
      %419 = vst [vmem:[#allocation2 + $0x38] sm:$0xff] %v411
      // Predicated region
      $region37: #{wide_residual_block_forward.9} parent=31 // pred_check
        %p420 = pneg %p259
      $region38: #{wide_residual_block_forward.9} parent=31 // pred_check_branch
        %422 = sbr.rel (%p420) target = $region40
      $region39: #{wide_residual_block_forward.9} parent=31 // pred_region
        %v423 = vld [vmem:[#allocation2] sm:$0xff]
        %v424 = vld [vmem:[#allocation2 + $0x8] sm:$0xff]
        %v425 = vld [vmem:[#allocation2 + $0x10] sm:$0xff]
        %v426 = vld [vmem:[#allocation2 + $0x18] sm:$0xff]
        %v427 = vld [vmem:[#allocation2 + $0x20] sm:$0xff]
        %v428 = vld [vmem:[#allocation2 + $0x28] sm:$0xff]
        %v429 = vld [vmem:[#allocation2 + $0x30] sm:$0xff]
        %v430 = vld [vmem:[#allocation2 + $0x38] sm:$0xff]
        %v431 = vld [vmem:[%s249] sm:$0x1]
        %v433 = vperm.slane %v431, 0
        %v435 = vadd.f32 %v423, %v433
        %v436 = vadd.f32 %v424, %v433
        %v437 = vadd.f32 %v425, %v433
        %v438 = vadd.f32 %v426, %v433
        %v439 = vadd.f32 %v427, %v433
        %v440 = vadd.f32 %v428, %v433
        %v441 = vadd.f32 %v429, %v433
        %v442 = vadd.f32 %v430, %v433
        %443 = vst [vmem:[%s257] sm:$0xff] %v435
        %444 = vst [vmem:[%s257 + $0x8] sm:$0xff] %v436
        %445 = vst [vmem:[%s257 + $0x10] sm:$0xff] %v437
        %446 = vst [vmem:[%s257 + $0x18] sm:$0xff] %v438
        %447 = vst [vmem:[%s257 + $0x20] sm:$0xff] %v439
        %448 = vst [vmem:[%s257 + $0x28] sm:$0xff] %v440
        %449 = vst [vmem:[%s257 + $0x30] sm:$0xff] %v441
        %450 = vst [vmem:[%s257 + $0x38] sm:$0xff] %v442
      $region40: #{wide_residual_block_forward.9} parent=31 // pred_fallthru
        _
      %s451 = smul.u32 8, %s20
      %p452 = scmp.lt.s32.totalorder %s451, 15
      %s453 = scalar_select %p452, %s451, 15
      %p454 = scmp.lt.s32.totalorder %s19, 0
      %s455 = scalar_select %p454, %s19, 0
      %s456 = sadd.s32 %s455, %s453
      %s457 = smul.addr %s456, 8
      %s458 = scalar_lea.vmem %s3, %s457
      // Predicated region
      $region41: #{wide_residual_block_forward.9} parent=31 // pred_check
        %p459 = pneg %p135
      $region42: #{wide_residual_block_forward.9} parent=31 // pred_check_branch
        %461 = sbr.rel (%p459) target = $region44
      $region43: #{wide_residual_block_forward.9} parent=31 // pred_region
        %s462 = smul.u32 8, %s20
      $region44: #{wide_residual_block_forward.9} parent=31 // pred_fallthru
        _
    $region32: #{wide_residual_block_forward.9} parent=5 // pred_fallthru
      _
    %p463 = scmp.le.s32.totalorder 2, %s9
    // Predicated region
    $region45: #{wide_residual_block_forward.9} parent=5 // pred_check
      %p464 = pneg %p463
    $region46: #{wide_residual_block_forward.9} parent=5 // pred_check_branch
      %466 = sbr.rel (%p464) target = $region48
    $region47: #{wide_residual_block_forward.9} parent=5 // pred_region
      %s467 = ssub.s32 %s9, 2
      // Predicated region
      $region49: #{wide_residual_block_forward.9} parent=47 // pred_check
        %p468 = pneg %p141
      $region50: #{wide_residual_block_forward.9} parent=47 // pred_check_branch
        %470 = sbr.rel (%p468) target = $region52
      $region51: #{wide_residual_block_forward.9} parent=47 // pred_region
        %s471 = smul.u32 8, %s23
        %p472 = scmp.lt.s32.totalorder %s471, 15
        %s473 = scalar_select %p472, %s471, 15
        %p474 = scmp.lt.s32.totalorder %s22, 0
        %s475 = scalar_select %p474, %s22, 0
        %s476 = sadd.s32 %s475, %s473
        %s477 = smul.addr %s476, 8
        %s478 = scalar_lea.vmem %s3, %s477
      $region52: #{wide_residual_block_forward.9} parent=47 // pred_fallthru
        _
    $region48: #{wide_residual_block_forward.9} parent=5 // pred_fallthru
      _
  $region6: #{wide_residual_block_forward.9} parent=0 // loop_footer
    %s13 = sadd.s32 1, %s9
  $region7: #{wide_residual_block_forward.9} parent=0 // loop_footer_branch
    %8 = sbr.rel target = $region3
  $region8: #{wide_residual_block_forward.9} parent=0 // loop_exit
    _

</llo_original>
